<compile_context>
chip_gen: v7x
topology: tpu7x:2x2x1
jax: 0.10.0
libtpu: 0.0.40
codegen_flags: <defaults>
</compile_context>

<pallas_src>
import math

import jax
import jax.numpy as jnp
import numpy as np
from jax.experimental import pallas as pl
from jax.experimental.pallas import tpu as pltpu


# ----------------------------------------------------------------------------
# Fused Pallas kernel: conv1+relu -> res block 1 -> res block 2 -> conv2
# ----------------------------------------------------------------------------
def _make_fused_kernel(Wp, LP):
    # Tap offsets in the flattened padded image, tap order (dy, dx) row-major
    # (matches the weight-matrix K ordering built in the wrapper).
    offs = [dy * Wp + dx for dy in (-1, 0, 1) for dx in (-1, 0, 1)]

    def kernel(x_ref, mask_ref, w_ref, b_ref, o_ref):
        mask = mask_ref[...]                                   # (1, LP)

        def conv(a, layer, relu):
            # im2col patch matrix (9*Cpad, LP) via lane rotations (XLU) only.
            taps = [a if off == 0 else pltpu.roll(a, (-off) % LP, axis=1)
                    for off in offs]
            patches = jnp.concatenate(taps, axis=0)            # (9*Cpad, LP)
            y = jnp.dot(w_ref[layer], patches,
                        preferred_element_type=jnp.float32)    # (Cpad, LP)
            y = y + b_ref[layer]                               # (Cpad,1) bcast
            if relu:
                y = jnp.maximum(y, 0.0)
            # Re-zero halo + trailing pad lanes -> valid zero padding for the
            # next layer (interior lanes are untouched).
            return y * mask

        a = x_ref[0]                                           # (Cpad, LP)
        h = conv(a, 0, True)                                   # conv1 + relu
        r = h
        h = conv(conv(h, 1, True), 2, False) + r               # res_nonlocal1
        r = h
        h = conv(conv(h, 3, True), 4, False) + r               # res_nonlocal2
        o_ref[0] = conv(h, 5, False).astype(o_ref.dtype)       # conv2

    return kernel


# ----------------------------------------------------------------------------
# Parameter init (PyTorch Conv2d-like: uniform +-1/sqrt(fan_in)), HWIO layout
# ----------------------------------------------------------------------------
def init_params(key, in_channels, num_channels):
    specs = [
        (in_channels, num_channels),   # conv1
        (num_channels, num_channels),  # res1.conv1
        (num_channels, num_channels),  # res1.conv2
        (num_channels, num_channels),  # res2.conv1
        (num_channels, num_channels),  # res2.conv2
        (num_channels, in_channels),   # conv2
    ]
    keys = jax.random.split(key, len(specs))
    layers = []
    for k, (cin, cout) in zip(keys, specs):
        kw, kb = jax.random.split(k)
        bound = 1.0 / math.sqrt(cin * 9)
        w = jax.random.uniform(kw, (3, 3, cin, cout), minval=-bound,
                               maxval=bound, dtype=jnp.float32)
        b = jax.random.uniform(kb, (cout,), minval=-bound, maxval=bound,
                               dtype=jnp.float32)
        layers.append((w, b))
    return layers


# ----------------------------------------------------------------------------
# Forward pass (NCHW in / NCHW out, matching the PyTorch module)
# ----------------------------------------------------------------------------
def denoiser_forward(x_nchw, layers, num_channels):
    N, Cin, H, W = x_nchw.shape
    Cpad = max(Cin, num_channels)
    Hp, Wp = H + 2, W + 2
    L = Hp * Wp
    LP = ((L + 127) // 128) * 128          # lane-dense flattened length

    # --- input prep: channel-major, zero spatial halo, flattened + lane pad --
    xp = jnp.pad(x_nchw.astype(jnp.float32),
                 ((0, 0), (0, Cpad - Cin), (1, 1), (1, 1)))
    xf = jnp.pad(xp.reshape(N, Cpad, L), ((0, 0), (0, 0), (0, LP - L)))

    # --- interior mask (1 at valid output pixels, 0 at halo + trailing pad) --
    m = np.zeros((Hp, Wp), np.float32)
    m[1:H + 1, 1:W + 1] = 1.0
    mask = jnp.asarray(np.pad(m.reshape(-1), (0, LP - L))[None, :])

    # --- stacked weight matrices (6, Cpad, 9*Cpad) and biases (6, Cpad, 1) ---
    w_mats, b_vecs = [], []
    for (w, b) in layers:
        cin, cout = w.shape[2], w.shape[3]
        wz = jnp.zeros((3, 3, Cpad, Cpad), jnp.float32)
        wz = wz.at[:, :, :cin, :cout].set(w)
        # K index = (ky*3 + kx) * Cpad + cin  (channel fastest)
        w_mats.append(jnp.transpose(wz, (3, 0, 1, 2)).reshape(Cpad, 9 * Cpad))
        b_vecs.append(jnp.zeros((Cpad, 1), jnp.float32).at[:cout, 0].set(b))
    w_all = jnp.stack(w_mats)              # (6, Cpad, 9*Cpad)
    b_all = jnp.stack(b_vecs)              # (6, Cpad, 1)

    kernel = _make_fused_kernel(Wp, LP)
    out_flat = pl.pallas_call(
        kernel,
        out_shape=jax.ShapeDtypeStruct((N, Cpad, LP), jnp.float32),
        grid=(N,),
        in_specs=[
            pl.BlockSpec((1, Cpad, LP), lambda n: (n, 0, 0)),       # image n
            pl.BlockSpec((1, LP), lambda n: (0, 0)),                # mask
            pl.BlockSpec((6, Cpad, 9 * Cpad), lambda n: (0, 0, 0)),  # weights
            pl.BlockSpec((6, Cpad, 1), lambda n: (0, 0, 0)),         # biases
        ],
        out_specs=pl.BlockSpec((1, Cpad, LP), lambda n: (n, 0, 0)),
        compiler_params=pltpu.CompilerParams(
            dimension_semantics=("parallel",)),
    )(xf, mask, w_all, b_all)

    # Un-flatten: drop channel padding, trailing pad and spatial halo -> NCHW.
    out = out_flat[:, :Cin, :L].reshape(N, Cin, Hp, Wp)[:, :, 1:H + 1, 1:W + 1]
    return out


# ----------------------------------------------------------------------------
# Pure-JAX reference (lax.conv) for correctness checking
# ----------------------------------------------------------------------------
def _ref_conv(x_nhwc, w, b, relu=False, residual=None):
    y = jax.lax.conv_general_dilated(
        x_nhwc, w, window_strides=(1, 1), padding="SAME",
        dimension_numbers=("NHWC", "HWIO", "NHWC"))
    y = y + b.reshape(1, 1, 1, -1)
    if relu:
        y = jnp.maximum(y, 0.0)
    if residual is not None:
        y = y + residual
    return y


def _ref_forward(x_nchw, layers):
    x = jnp.transpose(x_nchw, (0, 2, 3, 1))
    h = _ref_conv(x, *layers[0], relu=True)
    r = h
    h = _ref_conv(_ref_conv(h, *layers[1], relu=True), *layers[2], residual=r)
    r = h
    h = _ref_conv(_ref_conv(h, *layers[3], relu=True), *layers[4], residual=r)
    out = _ref_conv(h, *layers[5])
    return jnp.transpose(out, (0, 3, 1, 2))


if __name__ == "__main__":
    key = jax.random.PRNGKey(0)
    k_x, k_p = jax.random.split(key)

    batch, in_channels, num_channels, spatial = 2, 4, 8, 16
    x = jax.random.normal(k_x, (batch, in_channels, spatial, spatial),
                          dtype=jnp.float32)
    layers = init_params(k_p, in_channels, num_channels)

    fwd = jax.jit(lambda xx, pp: denoiser_forward(xx, pp, num_channels))
    out = jax.block_until_ready(fwd(x, layers))

    ref = jax.block_until_ready(_ref_forward(x, layers))
    np.testing.assert_allclose(np.asarray(out), np.asarray(ref),
                               rtol=1e-3, atol=1e-3)

    print("KERNEL_OK")
</pallas_src>

<mosaic_0001>
module attributes {stable_mosaic.version = 11 : i64} {
  func.func @kernel(%arg0: i32, %arg1: memref<1x8x384xf32, #tpu.memory_space<vmem>>, %arg2: memref<1x384xf32, #tpu.memory_space<vmem>>, %arg3: memref<6x8x72xf32, #tpu.memory_space<vmem>>, %arg4: memref<6x8x1xf32, #tpu.memory_space<vmem>>, %arg5: memref<1x8x384xf32, #tpu.memory_space<vmem>>) attributes {dimension_semantics = [#tpu.dimension_semantics<parallel>], iteration_bounds = array<i64: 2>, scalar_prefetch = 0 : i64, scratch_operands = 0 : i64, tpu.core_type = #tpu.core_type<tc>, window_params = [{transform_indices = @transform_0, window_bounds = array<i64: 1, 8, 384>}, {pipeline_mode = #tpu.pipeline_mode<synchronous>, transform_indices = @transform_1, window_bounds = array<i64: 1, 384>}, {pipeline_mode = #tpu.pipeline_mode<synchronous>, transform_indices = @transform_2, window_bounds = array<i64: 6, 8, 72>}, {pipeline_mode = #tpu.pipeline_mode<synchronous>, transform_indices = @transform_3, window_bounds = array<i64: 6, 8, 1>}, {transform_indices = @transform_4, window_bounds = array<i64: 1, 8, 384>}]} {
    %c0 = arith.constant 0 : index
    %c0_0 = arith.constant 0 : index
    %0 = vector.load %arg2[%c0, %c0_0] : memref<1x384xf32, #tpu.memory_space<vmem>>, vector<1x384xf32>
    %c0_1 = arith.constant 0 : index
    %c0_2 = arith.constant 0 : index
    %c0_3 = arith.constant 0 : index
    %1 = vector.load %arg1[%c0_1, %c0_2, %c0_3] : memref<1x8x384xf32, #tpu.memory_space<vmem>>, vector<1x8x384xf32>
    %2 = vector.shape_cast %1 : vector<1x8x384xf32> to vector<8x384xf32>
    %c19_i32 = arith.constant 19 : i32
    %3 = tpu.dynamic_rotate %2 by %c19_i32 dim 1 : vector<8x384xf32>, i32 -> vector<8x384xf32>
    %c18_i32 = arith.constant 18 : i32
    %4 = tpu.dynamic_rotate %2 by %c18_i32 dim 1 : vector<8x384xf32>, i32 -> vector<8x384xf32>
    %c17_i32 = arith.constant 17 : i32
    %5 = tpu.dynamic_rotate %2 by %c17_i32 dim 1 : vector<8x384xf32>, i32 -> vector<8x384xf32>
    %c1_i32 = arith.constant 1 : i32
    %6 = tpu.dynamic_rotate %2 by %c1_i32 dim 1 : vector<8x384xf32>, i32 -> vector<8x384xf32>
    %c383_i32 = arith.constant 383 : i32
    %7 = tpu.dynamic_rotate %2 by %c383_i32 dim 1 : vector<8x384xf32>, i32 -> vector<8x384xf32>
    %c367_i32 = arith.constant 367 : i32
    %8 = tpu.dynamic_rotate %2 by %c367_i32 dim 1 : vector<8x384xf32>, i32 -> vector<8x384xf32>
    %c366_i32 = arith.constant 366 : i32
    %9 = tpu.dynamic_rotate %2 by %c366_i32 dim 1 : vector<8x384xf32>, i32 -> vector<8x384xf32>
    %c365_i32 = arith.constant 365 : i32
    %10 = tpu.dynamic_rotate %2 by %c365_i32 dim 1 : vector<8x384xf32>, i32 -> vector<8x384xf32>
    %11 = tpu.concatenate %3, %4, %5, %6, %2, %7, %8, %9, %10 in 0 : vector<8x384xf32>, vector<8x384xf32>, vector<8x384xf32>, vector<8x384xf32>, vector<8x384xf32>, vector<8x384xf32>, vector<8x384xf32>, vector<8x384xf32>, vector<8x384xf32> -> vector<72x384xf32>
    %c0_4 = arith.constant 0 : index
    %c0_5 = arith.constant 0 : index
    %c0_6 = arith.constant 0 : index
    %12 = vector.load %arg3[%c0_4, %c0_5, %c0_6] : memref<6x8x72xf32, #tpu.memory_space<vmem>>, vector<1x8x72xf32>
    %13 = vector.shape_cast %12 : vector<1x8x72xf32> to vector<8x72xf32>
    %cst = arith.constant dense<0.000000e+00> : vector<8x384xf32>
    %14 = tpu.matmul %13, %11, %cst {dimension_numbers = #tpu.dot_dimension_numbers<[1], [0], [0], [1], [0, 0, 1, 1], [], []>} : vector<8x72xf32>, vector<72x384xf32>, vector<8x384xf32> -> vector<8x384xf32>
    %c0_7 = arith.constant 0 : index
    %c0_8 = arith.constant 0 : index
    %c0_9 = arith.constant 0 : index
    %15 = vector.load %arg4[%c0_7, %c0_8, %c0_9] : memref<6x8x1xf32, #tpu.memory_space<vmem>>, vector<1x8x1xf32>
    %16 = vector.shape_cast %15 : vector<1x8x1xf32> to vector<8x1xf32>
    %17 = vector.broadcast %16 : vector<8x1xf32> to vector<8x384xf32>
    %18 = arith.addf %14, %17 : vector<8x384xf32>
    %cst_10 = arith.constant 0.000000e+00 : f32
    %19 = vector.broadcast %cst_10 : f32 to vector<8x384xf32>
    %20 = arith.maximumf %18, %19 : vector<8x384xf32>
    %21 = vector.broadcast %0 : vector<1x384xf32> to vector<8x384xf32>
    %22 = arith.mulf %20, %21 : vector<8x384xf32>
    %c19_i32_11 = arith.constant 19 : i32
    %23 = tpu.dynamic_rotate %22 by %c19_i32_11 dim 1 : vector<8x384xf32>, i32 -> vector<8x384xf32>
    %c18_i32_12 = arith.constant 18 : i32
    %24 = tpu.dynamic_rotate %22 by %c18_i32_12 dim 1 : vector<8x384xf32>, i32 -> vector<8x384xf32>
    %c17_i32_13 = arith.constant 17 : i32
    %25 = tpu.dynamic_rotate %22 by %c17_i32_13 dim 1 : vector<8x384xf32>, i32 -> vector<8x384xf32>
    %c1_i32_14 = arith.constant 1 : i32
    %26 = tpu.dynamic_rotate %22 by %c1_i32_14 dim 1 : vector<8x384xf32>, i32 -> vector<8x384xf32>
    %c383_i32_15 = arith.constant 383 : i32
    %27 = tpu.dynamic_rotate %22 by %c383_i32_15 dim 1 : vector<8x384xf32>, i32 -> vector<8x384xf32>
    %c367_i32_16 = arith.constant 367 : i32
    %28 = tpu.dynamic_rotate %22 by %c367_i32_16 dim 1 : vector<8x384xf32>, i32 -> vector<8x384xf32>
    %c366_i32_17 = arith.constant 366 : i32
    %29 = tpu.dynamic_rotate %22 by %c366_i32_17 dim 1 : vector<8x384xf32>, i32 -> vector<8x384xf32>
    %c365_i32_18 = arith.constant 365 : i32
    %30 = tpu.dynamic_rotate %22 by %c365_i32_18 dim 1 : vector<8x384xf32>, i32 -> vector<8x384xf32>
    %31 = tpu.concatenate %23, %24, %25, %26, %22, %27, %28, %29, %30 in 0 : vector<8x384xf32>, vector<8x384xf32>, vector<8x384xf32>, vector<8x384xf32>, vector<8x384xf32>, vector<8x384xf32>, vector<8x384xf32>, vector<8x384xf32>, vector<8x384xf32> -> vector<72x384xf32>
    %c1 = arith.constant 1 : index
    %c0_19 = arith.constant 0 : index
    %c0_20 = arith.constant 0 : index
    %32 = vector.load %arg3[%c1, %c0_19, %c0_20] : memref<6x8x72xf32, #tpu.memory_space<vmem>>, vector<1x8x72xf32>
    %33 = vector.shape_cast %32 : vector<1x8x72xf32> to vector<8x72xf32>
    %cst_21 = arith.constant dense<0.000000e+00> : vector<8x384xf32>
    %34 = tpu.matmul %33, %31, %cst_21 {dimension_numbers = #tpu.dot_dimension_numbers<[1], [0], [0], [1], [0, 0, 1, 1], [], []>} : vector<8x72xf32>, vector<72x384xf32>, vector<8x384xf32> -> vector<8x384xf32>
    %c1_22 = arith.constant 1 : index
    %c0_23 = arith.constant 0 : index
    %c0_24 = arith.constant 0 : index
    %35 = vector.load %arg4[%c1_22, %c0_23, %c0_24] : memref<6x8x1xf32, #tpu.memory_space<vmem>>, vector<1x8x1xf32>
    %36 = vector.shape_cast %35 : vector<1x8x1xf32> to vector<8x1xf32>
    %37 = vector.broadcast %36 : vector<8x1xf32> to vector<8x384xf32>
    %38 = arith.addf %34, %37 : vector<8x384xf32>
    %cst_25 = arith.constant 0.000000e+00 : f32
    %39 = vector.broadcast %cst_25 : f32 to vector<8x384xf32>
    %40 = arith.maximumf %38, %39 : vector<8x384xf32>
    %41 = vector.broadcast %0 : vector<1x384xf32> to vector<8x384xf32>
    %42 = arith.mulf %40, %41 : vector<8x384xf32>
    %c19_i32_26 = arith.constant 19 : i32
    %43 = tpu.dynamic_rotate %42 by %c19_i32_26 dim 1 : vector<8x384xf32>, i32 -> vector<8x384xf32>
    %c18_i32_27 = arith.constant 18 : i32
    %44 = tpu.dynamic_rotate %42 by %c18_i32_27 dim 1 : vector<8x384xf32>, i32 -> vector<8x384xf32>
    %c17_i32_28 = arith.constant 17 : i32
    %45 = tpu.dynamic_rotate %42 by %c17_i32_28 dim 1 : vector<8x384xf32>, i32 -> vector<8x384xf32>
    %c1_i32_29 = arith.constant 1 : i32
    %46 = tpu.dynamic_rotate %42 by %c1_i32_29 dim 1 : vector<8x384xf32>, i32 -> vector<8x384xf32>
    %c383_i32_30 = arith.constant 383 : i32
    %47 = tpu.dynamic_rotate %42 by %c383_i32_30 dim 1 : vector<8x384xf32>, i32 -> vector<8x384xf32>
    %c367_i32_31 = arith.constant 367 : i32
    %48 = tpu.dynamic_rotate %42 by %c367_i32_31 dim 1 : vector<8x384xf32>, i32 -> vector<8x384xf32>
    %c366_i32_32 = arith.constant 366 : i32
    %49 = tpu.dynamic_rotate %42 by %c366_i32_32 dim 1 : vector<8x384xf32>, i32 -> vector<8x384xf32>
    %c365_i32_33 = arith.constant 365 : i32
    %50 = tpu.dynamic_rotate %42 by %c365_i32_33 dim 1 : vector<8x384xf32>, i32 -> vector<8x384xf32>
    %51 = tpu.concatenate %43, %44, %45, %46, %42, %47, %48, %49, %50 in 0 : vector<8x384xf32>, vector<8x384xf32>, vector<8x384xf32>, vector<8x384xf32>, vector<8x384xf32>, vector<8x384xf32>, vector<8x384xf32>, vector<8x384xf32>, vector<8x384xf32> -> vector<72x384xf32>
    %c2 = arith.constant 2 : index
    %c0_34 = arith.constant 0 : index
    %c0_35 = arith.constant 0 : index
    %52 = vector.load %arg3[%c2, %c0_34, %c0_35] : memref<6x8x72xf32, #tpu.memory_space<vmem>>, vector<1x8x72xf32>
    %53 = vector.shape_cast %52 : vector<1x8x72xf32> to vector<8x72xf32>
    %cst_36 = arith.constant dense<0.000000e+00> : vector<8x384xf32>
    %54 = tpu.matmul %53, %51, %cst_36 {dimension_numbers = #tpu.dot_dimension_numbers<[1], [0], [0], [1], [0, 0, 1, 1], [], []>} : vector<8x72xf32>, vector<72x384xf32>, vector<8x384xf32> -> vector<8x384xf32>
    %c2_37 = arith.constant 2 : index
    %c0_38 = arith.constant 0 : index
    %c0_39 = arith.constant 0 : index
    %55 = vector.load %arg4[%c2_37, %c0_38, %c0_39] : memref<6x8x1xf32, #tpu.memory_space<vmem>>, vector<1x8x1xf32>
    %56 = vector.shape_cast %55 : vector<1x8x1xf32> to vector<8x1xf32>
    %57 = vector.broadcast %56 : vector<8x1xf32> to vector<8x384xf32>
    %58 = arith.addf %54, %57 : vector<8x384xf32>
    %59 = vector.broadcast %0 : vector<1x384xf32> to vector<8x384xf32>
    %60 = arith.mulf %58, %59 : vector<8x384xf32>
    %61 = arith.addf %60, %22 : vector<8x384xf32>
    %c19_i32_40 = arith.constant 19 : i32
    %62 = tpu.dynamic_rotate %61 by %c19_i32_40 dim 1 : vector<8x384xf32>, i32 -> vector<8x384xf32>
    %c18_i32_41 = arith.constant 18 : i32
    %63 = tpu.dynamic_rotate %61 by %c18_i32_41 dim 1 : vector<8x384xf32>, i32 -> vector<8x384xf32>
    %c17_i32_42 = arith.constant 17 : i32
    %64 = tpu.dynamic_rotate %61 by %c17_i32_42 dim 1 : vector<8x384xf32>, i32 -> vector<8x384xf32>
    %c1_i32_43 = arith.constant 1 : i32
    %65 = tpu.dynamic_rotate %61 by %c1_i32_43 dim 1 : vector<8x384xf32>, i32 -> vector<8x384xf32>
    %c383_i32_44 = arith.constant 383 : i32
    %66 = tpu.dynamic_rotate %61 by %c383_i32_44 dim 1 : vector<8x384xf32>, i32 -> vector<8x384xf32>
    %c367_i32_45 = arith.constant 367 : i32
    %67 = tpu.dynamic_rotate %61 by %c367_i32_45 dim 1 : vector<8x384xf32>, i32 -> vector<8x384xf32>
    %c366_i32_46 = arith.constant 366 : i32
    %68 = tpu.dynamic_rotate %61 by %c366_i32_46 dim 1 : vector<8x384xf32>, i32 -> vector<8x384xf32>
    %c365_i32_47 = arith.constant 365 : i32
    %69 = tpu.dynamic_rotate %61 by %c365_i32_47 dim 1 : vector<8x384xf32>, i32 -> vector<8x384xf32>
    %70 = tpu.concatenate %62, %63, %64, %65, %61, %66, %67, %68, %69 in 0 : vector<8x384xf32>, vector<8x384xf32>, vector<8x384xf32>, vector<8x384xf32>, vector<8x384xf32>, vector<8x384xf32>, vector<8x384xf32>, vector<8x384xf32>, vector<8x384xf32> -> vector<72x384xf32>
    %c3 = arith.constant 3 : index
    %c0_48 = arith.constant 0 : index
    %c0_49 = arith.constant 0 : index
    %71 = vector.load %arg3[%c3, %c0_48, %c0_49] : memref<6x8x72xf32, #tpu.memory_space<vmem>>, vector<1x8x72xf32>
    %72 = vector.shape_cast %71 : vector<1x8x72xf32> to vector<8x72xf32>
    %cst_50 = arith.constant dense<0.000000e+00> : vector<8x384xf32>
    %73 = tpu.matmul %72, %70, %cst_50 {dimension_numbers = #tpu.dot_dimension_numbers<[1], [0], [0], [1], [0, 0, 1, 1], [], []>} : vector<8x72xf32>, vector<72x384xf32>, vector<8x384xf32> -> vector<8x384xf32>
    %c3_51 = arith.constant 3 : index
    %c0_52 = arith.constant 0 : index
    %c0_53 = arith.constant 0 : index
    %74 = vector.load %arg4[%c3_51, %c0_52, %c0_53] : memref<6x8x1xf32, #tpu.memory_space<vmem>>, vector<1x8x1xf32>
    %75 = vector.shape_cast %74 : vector<1x8x1xf32> to vector<8x1xf32>
    %76 = vector.broadcast %75 : vector<8x1xf32> to vector<8x384xf32>
    %77 = arith.addf %73, %76 : vector<8x384xf32>
    %cst_54 = arith.constant 0.000000e+00 : f32
    %78 = vector.broadcast %cst_54 : f32 to vector<8x384xf32>
    %79 = arith.maximumf %77, %78 : vector<8x384xf32>
    %80 = vector.broadcast %0 : vector<1x384xf32> to vector<8x384xf32>
    %81 = arith.mulf %79, %80 : vector<8x384xf32>
    %c19_i32_55 = arith.constant 19 : i32
    %82 = tpu.dynamic_rotate %81 by %c19_i32_55 dim 1 : vector<8x384xf32>, i32 -> vector<8x384xf32>
    %c18_i32_56 = arith.constant 18 : i32
    %83 = tpu.dynamic_rotate %81 by %c18_i32_56 dim 1 : vector<8x384xf32>, i32 -> vector<8x384xf32>
    %c17_i32_57 = arith.constant 17 : i32
    %84 = tpu.dynamic_rotate %81 by %c17_i32_57 dim 1 : vector<8x384xf32>, i32 -> vector<8x384xf32>
    %c1_i32_58 = arith.constant 1 : i32
    %85 = tpu.dynamic_rotate %81 by %c1_i32_58 dim 1 : vector<8x384xf32>, i32 -> vector<8x384xf32>
    %c383_i32_59 = arith.constant 383 : i32
    %86 = tpu.dynamic_rotate %81 by %c383_i32_59 dim 1 : vector<8x384xf32>, i32 -> vector<8x384xf32>
    %c367_i32_60 = arith.constant 367 : i32
    %87 = tpu.dynamic_rotate %81 by %c367_i32_60 dim 1 : vector<8x384xf32>, i32 -> vector<8x384xf32>
    %c366_i32_61 = arith.constant 366 : i32
    %88 = tpu.dynamic_rotate %81 by %c366_i32_61 dim 1 : vector<8x384xf32>, i32 -> vector<8x384xf32>
    %c365_i32_62 = arith.constant 365 : i32
    %89 = tpu.dynamic_rotate %81 by %c365_i32_62 dim 1 : vector<8x384xf32>, i32 -> vector<8x384xf32>
    %90 = tpu.concatenate %82, %83, %84, %85, %81, %86, %87, %88, %89 in 0 : vector<8x384xf32>, vector<8x384xf32>, vector<8x384xf32>, vector<8x384xf32>, vector<8x384xf32>, vector<8x384xf32>, vector<8x384xf32>, vector<8x384xf32>, vector<8x384xf32> -> vector<72x384xf32>
    %c4 = arith.constant 4 : index
    %c0_63 = arith.constant 0 : index
    %c0_64 = arith.constant 0 : index
    %91 = vector.load %arg3[%c4, %c0_63, %c0_64] : memref<6x8x72xf32, #tpu.memory_space<vmem>>, vector<1x8x72xf32>
    %92 = vector.shape_cast %91 : vector<1x8x72xf32> to vector<8x72xf32>
    %cst_65 = arith.constant dense<0.000000e+00> : vector<8x384xf32>
    %93 = tpu.matmul %92, %90, %cst_65 {dimension_numbers = #tpu.dot_dimension_numbers<[1], [0], [0], [1], [0, 0, 1, 1], [], []>} : vector<8x72xf32>, vector<72x384xf32>, vector<8x384xf32> -> vector<8x384xf32>
    %c4_66 = arith.constant 4 : index
    %c0_67 = arith.constant 0 : index
    %c0_68 = arith.constant 0 : index
    %94 = vector.load %arg4[%c4_66, %c0_67, %c0_68] : memref<6x8x1xf32, #tpu.memory_space<vmem>>, vector<1x8x1xf32>
    %95 = vector.shape_cast %94 : vector<1x8x1xf32> to vector<8x1xf32>
    %96 = vector.broadcast %95 : vector<8x1xf32> to vector<8x384xf32>
    %97 = arith.addf %93, %96 : vector<8x384xf32>
    %98 = vector.broadcast %0 : vector<1x384xf32> to vector<8x384xf32>
    %99 = arith.mulf %97, %98 : vector<8x384xf32>
    %100 = arith.addf %99, %61 : vector<8x384xf32>
    %c19_i32_69 = arith.constant 19 : i32
    %101 = tpu.dynamic_rotate %100 by %c19_i32_69 dim 1 : vector<8x384xf32>, i32 -> vector<8x384xf32>
    %c18_i32_70 = arith.constant 18 : i32
    %102 = tpu.dynamic_rotate %100 by %c18_i32_70 dim 1 : vector<8x384xf32>, i32 -> vector<8x384xf32>
    %c17_i32_71 = arith.constant 17 : i32
    %103 = tpu.dynamic_rotate %100 by %c17_i32_71 dim 1 : vector<8x384xf32>, i32 -> vector<8x384xf32>
    %c1_i32_72 = arith.constant 1 : i32
    %104 = tpu.dynamic_rotate %100 by %c1_i32_72 dim 1 : vector<8x384xf32>, i32 -> vector<8x384xf32>
    %c383_i32_73 = arith.constant 383 : i32
    %105 = tpu.dynamic_rotate %100 by %c383_i32_73 dim 1 : vector<8x384xf32>, i32 -> vector<8x384xf32>
    %c367_i32_74 = arith.constant 367 : i32
    %106 = tpu.dynamic_rotate %100 by %c367_i32_74 dim 1 : vector<8x384xf32>, i32 -> vector<8x384xf32>
    %c366_i32_75 = arith.constant 366 : i32
    %107 = tpu.dynamic_rotate %100 by %c366_i32_75 dim 1 : vector<8x384xf32>, i32 -> vector<8x384xf32>
    %c365_i32_76 = arith.constant 365 : i32
    %108 = tpu.dynamic_rotate %100 by %c365_i32_76 dim 1 : vector<8x384xf32>, i32 -> vector<8x384xf32>
    %109 = tpu.concatenate %101, %102, %103, %104, %100, %105, %106, %107, %108 in 0 : vector<8x384xf32>, vector<8x384xf32>, vector<8x384xf32>, vector<8x384xf32>, vector<8x384xf32>, vector<8x384xf32>, vector<8x384xf32>, vector<8x384xf32>, vector<8x384xf32> -> vector<72x384xf32>
    %c5 = arith.constant 5 : index
    %c0_77 = arith.constant 0 : index
    %c0_78 = arith.constant 0 : index
    %110 = vector.load %arg3[%c5, %c0_77, %c0_78] : memref<6x8x72xf32, #tpu.memory_space<vmem>>, vector<1x8x72xf32>
    %111 = vector.shape_cast %110 : vector<1x8x72xf32> to vector<8x72xf32>
    %cst_79 = arith.constant dense<0.000000e+00> : vector<8x384xf32>
    %112 = tpu.matmul %111, %109, %cst_79 {dimension_numbers = #tpu.dot_dimension_numbers<[1], [0], [0], [1], [0, 0, 1, 1], [], []>} : vector<8x72xf32>, vector<72x384xf32>, vector<8x384xf32> -> vector<8x384xf32>
    %c5_80 = arith.constant 5 : index
    %c0_81 = arith.constant 0 : index
    %c0_82 = arith.constant 0 : index
    %113 = vector.load %arg4[%c5_80, %c0_81, %c0_82] : memref<6x8x1xf32, #tpu.memory_space<vmem>>, vector<1x8x1xf32>
    %114 = vector.shape_cast %113 : vector<1x8x1xf32> to vector<8x1xf32>
    %115 = vector.broadcast %114 : vector<8x1xf32> to vector<8x384xf32>
    %116 = arith.addf %112, %115 : vector<8x384xf32>
    %117 = vector.broadcast %0 : vector<1x384xf32> to vector<8x384xf32>
    %118 = arith.mulf %116, %117 : vector<8x384xf32>
    %c0_83 = arith.constant 0 : index
    %c0_84 = arith.constant 0 : index
    %c0_85 = arith.constant 0 : index
    %119 = vector.load %arg5[%c0_83, %c0_84, %c0_85] : memref<1x8x384xf32, #tpu.memory_space<vmem>>, vector<1x8x384xf32>
    %120 = vector.shape_cast %119 : vector<1x8x384xf32> to vector<8x384xf32>
    %121 = vector.shape_cast %118 : vector<8x384xf32> to vector<1x8x384xf32>
    tpu.vector_store %arg5[%c0_83, %c0_84, %c0_85], %121 {strides = array<i32>} : memref<1x8x384xf32, #tpu.memory_space<vmem>>, vector<1x8x384xf32>,
    return
  }
  func.func @transform_0(%arg0: i32) -> (i32, i32, i32) {
    %c0_i32 = arith.constant 0 : i32
    %c0_i32_0 = arith.constant 0 : i32
    %c0_i32_1 = arith.constant 0 : i32
    return %arg0, %c0_i32, %c0_i32_0 : i32, i32, i32
  }
  func.func @transform_1(%arg0: i32) -> (i32, i32) {
    %c0_i32 = arith.constant 0 : i32
    %c0_i32_0 = arith.constant 0 : i32
    %c0_i32_1 = arith.constant 0 : i32
    return %c0_i32, %c0_i32_0 : i32, i32
  }
  func.func @transform_2(%arg0: i32) -> (i32, i32, i32) {
    %c0_i32 = arith.constant 0 : i32
    %c0_i32_0 = arith.constant 0 : i32
    %c0_i32_1 = arith.constant 0 : i32
    %c0_i32_2 = arith.constant 0 : i32
    return %c0_i32, %c0_i32_0, %c0_i32_1 : i32, i32, i32
  }
  func.func @transform_3(%arg0: i32) -> (i32, i32, i32) {
    %c0_i32 = arith.constant 0 : i32
    %c0_i32_0 = arith.constant 0 : i32
    %c0_i32_1 = arith.constant 0 : i32
    %c0_i32_2 = arith.constant 0 : i32
    return %c0_i32, %c0_i32_0, %c0_i32_1 : i32, i32, i32
  }
  func.func @transform_4(%arg0: i32) -> (i32, i32, i32) {
    %c0_i32 = arith.constant 0 : i32
    %c0_i32_0 = arith.constant 0 : i32
    %c0_i32_1 = arith.constant 0 : i32
    return %arg0, %c0_i32, %c0_i32_0 : i32, i32, i32
  }
}

</mosaic_0001>

<llo_original>
// kernel: _lambda_.1
$region0: #{_lambda_.1}
  #allocation0 [shape = 'u32[]', space=smem, size = 0x4, offset = 0x4, fixed_abs, tag = 'smem constant byte address 0x4 - core index']
  #allocation1 [shape = 'u32[144,128]{1,0:T(1,128)}', space=vmem, size = 0x12000, scoped, tag = 'internal scratch']
  %s0 = inlined_call_operand.vmem [shape: f32[2,8,384], index: 0, kind: input, shape index: {}]
  %s1 = inlined_call_operand.vmem [shape: f32[1,384], index: 1, kind: input, shape index: {}]
  %s2 = inlined_call_operand.vmem [shape: f32[6,8,72], index: 2, kind: input, shape index: {}]
  %s3 = inlined_call_operand.vmem [shape: f32[6,8,1], index: 3, kind: input, shape index: {}]
  %s4 = inlined_call_operand.vmem [shape: f32[2,8,384], index: 4, kind: output, shape index: {}]
  %s5 = sld [smem:[#allocation0]]
  $region49: #{_lambda_.1} parent=0
    _
  %s7 = ssub.s32 1, %s5
  %s8 = scalar_select 0, %s7, %s5
  loop: start=0, step=1, limit=4
  $region2: #{_lambda_.1} parent=0 // loop_pre_header
    _
  $region3: #{_lambda_.1} parent=0 // loop_header
    %s10 = sphi 0, %s14
    %p11 = scmp.ge.s32.totalorder %s10, 4
    %s20 = sphi 0, %s22
    %s23 = sphi 0, %s20
    %s24 = sphi 0, %s23
    %s40 = sphi 0, %s24
    %s44 = sphi 0, %s44
    %s46 = sphi 0, %s44
    %s47 = sphi 0, %s46
    %s61 = sphi 0, %s47
    %s65 = sphi 0, %s65
    %s67 = sphi 0, %s65
    %s68 = sphi 0, %s67
    %s82 = sphi 0, %s68
    %s86 = sphi 0, %s86
    %s88 = sphi 0, %s86
    %s89 = sphi 0, %s88
    %s103 = sphi 0, %s89
    %s109 = sphi 0, %s111
    %s112 = sphi 0, %s109
    %s113 = sphi 0, %s112
    %s129 = sphi 0, %s113
  $region4: #{_lambda_.1} parent=0 // loop_header_branch
    %13 = sbr.rel (%p11) target = $region8
  $region5: #{_lambda_.1} parent=0 // loop_body
    %s15 = ssub.s32 %s10, 1
    %s16 = ssub.s32 %s10, 2
    %s17 = sadd.s32 %s10, 1
    %s18 = ssub.s32 %s10, %s17
    %p19 = scmp.eq.s32.totalorder %s18, 0
    %s21 = sadd.s32 %s20, 1
    %s22 = scalar_select %p19, %s20, %s21
    %p25 = pneg %p19
    %p26 = scmp.eq.s32.totalorder %s10, 1
    %p27 = por %p25, %p26
    %p28 = scmp.ne.s32.totalorder %s20, %s23
    %p29 = scmp.eq.s32.totalorder %s10, 0
    %p30 = por %p28, %p29
    %p31 = scmp.ne.s32.totalorder %s20, %s23
    %p32 = scmp.eq.s32.totalorder %s15, 1
    %p33 = por %p31, %p32
    %p34 = scmp.ne.s32.totalorder %s23, %s24
    %p35 = scmp.eq.s32.totalorder %s15, 0
    %p36 = por %p34, %p35
    %p37 = scmp.ne.s32.totalorder %s23, %s24
    %p38 = scmp.eq.s32.totalorder %s16, 1
    %p39 = por %p37, %p38
    %p41 = scmp.ne.s32.totalorder %s24, %s40
    %p42 = scmp.eq.s32.totalorder %s16, 0
    %p43 = por %p41, %p42
    %s45 = sadd.s32 %s44, 1
    %p48 = scmp.eq.s32.totalorder %s10, 1
    %p49 = scmp.ne.s32.totalorder %s44, %s46
    %p50 = scmp.eq.s32.totalorder %s10, 0
    %p51 = por %p49, %p50
    %p52 = scmp.ne.s32.totalorder %s44, %s46
    %p53 = scmp.eq.s32.totalorder %s15, 1
    %p54 = por %p52, %p53
    %p55 = scmp.ne.s32.totalorder %s46, %s47
    %p56 = scmp.eq.s32.totalorder %s15, 0
    %p57 = por %p55, %p56
    %p58 = scmp.ne.s32.totalorder %s46, %s47
    %p59 = scmp.eq.s32.totalorder %s16, 1
    %p60 = por %p58, %p59
    %p62 = scmp.ne.s32.totalorder %s47, %s61
    %p63 = scmp.eq.s32.totalorder %s16, 0
    %p64 = por %p62, %p63
    %s66 = sadd.s32 %s65, 1
    %p69 = scmp.eq.s32.totalorder %s10, 1
    %p70 = scmp.ne.s32.totalorder %s65, %s67
    %p71 = scmp.eq.s32.totalorder %s10, 0
    %p72 = por %p70, %p71
    %p73 = scmp.ne.s32.totalorder %s65, %s67
    %p74 = scmp.eq.s32.totalorder %s15, 1
    %p75 = por %p73, %p74
    %p76 = scmp.ne.s32.totalorder %s67, %s68
    %p77 = scmp.eq.s32.totalorder %s15, 0
    %p78 = por %p76, %p77
    %p79 = scmp.ne.s32.totalorder %s67, %s68
    %p80 = scmp.eq.s32.totalorder %s16, 1
    %p81 = por %p79, %p80
    %p83 = scmp.ne.s32.totalorder %s68, %s82
    %p84 = scmp.eq.s32.totalorder %s16, 0
    %p85 = por %p83, %p84
    %s87 = sadd.s32 %s86, 1
    %p90 = scmp.eq.s32.totalorder %s10, 1
    %p91 = scmp.ne.s32.totalorder %s86, %s88
    %p92 = scmp.eq.s32.totalorder %s10, 0
    %p93 = por %p91, %p92
    %p94 = scmp.ne.s32.totalorder %s86, %s88
    %p95 = scmp.eq.s32.totalorder %s15, 1
    %p96 = por %p94, %p95
    %p97 = scmp.ne.s32.totalorder %s88, %s89
    %p98 = scmp.eq.s32.totalorder %s15, 0
    %p99 = por %p97, %p98
    %p100 = scmp.ne.s32.totalorder %s88, %s89
    %p101 = scmp.eq.s32.totalorder %s16, 1
    %p102 = por %p100, %p101
    %p104 = scmp.ne.s32.totalorder %s89, %s103
    %p105 = scmp.eq.s32.totalorder %s16, 0
    %p106 = por %p104, %p105
    %s107 = ssub.s32 %s10, %s17
    %p108 = scmp.eq.s32.totalorder %s107, 0
    %s110 = sadd.s32 %s109, 1
    %s111 = scalar_select %p108, %s109, %s110
    %p114 = pneg %p108
    %p115 = scmp.eq.s32.totalorder %s10, 1
    %p116 = por %p114, %p115
    %p117 = scmp.ne.s32.totalorder %s109, %s112
    %p118 = scmp.eq.s32.totalorder %s10, 0
    %p119 = por %p117, %p118
    %p120 = scmp.ne.s32.totalorder %s109, %s112
    %p121 = scmp.eq.s32.totalorder %s15, 1
    %p122 = por %p120, %p121
    %p123 = scmp.ne.s32.totalorder %s112, %s113
    %p124 = scmp.eq.s32.totalorder %s15, 0
    %p125 = por %p123, %p124
    %p126 = scmp.ne.s32.totalorder %s112, %s113
    %p127 = scmp.eq.s32.totalorder %s16, 1
    %p128 = por %p126, %p127
    %p130 = scmp.ne.s32.totalorder %s113, %s129
    %p131 = scmp.eq.s32.totalorder %s16, 0
    %p132 = por %p130, %p131
    %p133 = scmp.le.s32.totalorder 1, %s10
    %p134 = scmp.lt.s32.totalorder %s10, 3
    %p135 = pnand %p133, %p134
    %p136 = pneg %p135
    // Predicated region
    $region9: #{_lambda_.1} parent=5 // pred_check
      _
    $region10: #{_lambda_.1} parent=5 // pred_check_branch
      %138 = sbr.rel (%p135) target = $region12
    $region11: #{_lambda_.1} parent=5 // pred_region
      %s139 = ssub.s32 %s10, 1
      // Predicated region
      $region13: #{_lambda_.1} parent=11 // pred_check
        %p140 = pneg %p57
      $region14: #{_lambda_.1} parent=11 // pred_check_branch
        %142 = sbr.rel (%p140) target = $region16
      $region15: #{_lambda_.1} parent=11 // pred_region
        _
      $region16: #{_lambda_.1} parent=11 // pred_fallthru
        _
      // Predicated region
      $region17: #{_lambda_.1} parent=11 // pred_check
        %p143 = pneg %p78
      $region18: #{_lambda_.1} parent=11 // pred_check_branch
        %145 = sbr.rel (%p143) target = $region20
      $region19: #{_lambda_.1} parent=11 // pred_region
        _
      $region20: #{_lambda_.1} parent=11 // pred_fallthru
        _
      // Predicated region
      $region21: #{_lambda_.1} parent=11 // pred_check
        %p146 = pneg %p99
      $region22: #{_lambda_.1} parent=11 // pred_check_branch
        %148 = sbr.rel (%p146) target = $region24
      $region23: #{_lambda_.1} parent=11 // pred_region
        _
      $region24: #{_lambda_.1} parent=11 // pred_fallthru
        _
    $region12: #{_lambda_.1} parent=5 // pred_fallthru
      _
    %p149 = scmp.lt.s32.totalorder %s10, 2
    // Predicated region
    $region25: #{_lambda_.1} parent=5 // pred_check
      %p150 = pneg %p149
    $region26: #{_lambda_.1} parent=5 // pred_check_branch
      %152 = sbr.rel (%p150) target = $region28
    $region27: #{_lambda_.1} parent=5 // pred_region
      // Predicated region
      $region29: #{_lambda_.1} parent=27 // pred_check
        %p153 = pneg %p30
      $region30: #{_lambda_.1} parent=27 // pred_check_branch
        %155 = sbr.rel (%p153) target = $region32
      $region31: #{_lambda_.1} parent=27 // pred_region
        %p156 = scmp.lt.s32.totalorder %s10, 1
        %s157 = scalar_select %p156, %s10, 1
        %s158 = smul.addr %s157, 3
        %s159 = smul.addr %s158, 8
        %s160 = scalar_lea.vmem %s0, %s159
      $region32: #{_lambda_.1} parent=27 // pred_fallthru
        _
    $region28: #{_lambda_.1} parent=5 // pred_fallthru
      _
    %p161 = scmp.le.s32.totalorder 1, %s10
    %p162 = scmp.lt.s32.totalorder %s10, 3
    %p163 = pnand %p161, %p162
    %p164 = pneg %p163
    // Predicated region
    $region33: #{_lambda_.1} parent=5 // pred_check
      _
    $region34: #{_lambda_.1} parent=5 // pred_check_branch
      %166 = sbr.rel (%p163) target = $region36
    $region35: #{_lambda_.1} parent=5 // pred_region
      %s167 = ssub.s32 %s10, 1
      %p168 = scmp.lt.s32.totalorder %s15, 1
      %s169 = scalar_select %p168, %s15, 1
      %s170 = smul.addr %s169, 3
      %s171 = smul.addr %s170, 8
      %s172 = scalar_lea.vmem %s0, %s171
      %p173 = pneg %p36
      %p174 = pneg %p33
      %p175 = pneg %p57
      %p176 = pneg %p54
      %p177 = pneg %p78
      %p178 = pneg %p75
      %p179 = pneg %p99
      %p180 = pneg %p96
      %p181 = pneg %p125
      %p182 = pneg %p122
      %p183 = scmp.lt.s32.totalorder %s15, 1
      %s184 = scalar_select %p183, %s15, 1
      %s185 = smul.addr %s184, 3
      %s186 = smul.addr %s185, 8
      %s187 = scalar_lea.vmem %s4, %s186
      %p188 = scmp.lt.s32.totalorder %s15, 1
      %s189 = scalar_select %p188, %s15, 1
      %s190 = smul.addr %s189, 3
      %s191 = smul.addr %s190, 8
      %s192 = scalar_lea.vmem %s0, %s191
      %p193 = scmp.lt.s32.totalorder %s15, 1
      %s194 = scalar_select %p193, %s15, 1
      %s195 = smul.addr %s194, 3
      %s196 = smul.addr %s195, 8
      %s197 = scalar_lea.vmem %s4, %s196
      %v198 = vld [vmem:[%s1] sm:$0x7]
      %v199 = vld [vmem:[%s192] sm:$0xff]
      %v200 = vld [vmem:[%s192 + $0x8] sm:$0xff]
      %v201 = vld [vmem:[%s192 + $0x10] sm:$0xff]
      %202 = vrot.lane.b32.xlu0 %v199, 19
      %v203 = vpop.permute.xlu0 %202
      %204 = vrot.lane.b32.xlu0 %v200, 19
      %v205 = vpop.permute.xlu0 %204
      %206 = vrot.lane.b32.xlu0 %v201, 19
      %v207 = vpop.permute.xlu0 %206
      %v208 = vlaneseq
      %v209 = vand.u32 %v208, 127
      %vm210 = vcmp.lt.s32.totalorder %v209, 19
      %v211 = vsel %vm210, %v205, %v207
      %v212 = vsel %vm210, %v203, %v205
      %v213 = vsel %vm210, %v207, %v203
      %214 = vrot.lane.b32.xlu0 %v199, 18
      %v215 = vpop.permute.xlu0 %214
      %216 = vrot.lane.b32.xlu0 %v200, 18
      %v217 = vpop.permute.xlu0 %216
      %218 = vrot.lane.b32.xlu0 %v201, 18
      %v219 = vpop.permute.xlu0 %218
      %vm220 = vcmp.lt.s32.totalorder %v209, 18
      %v221 = vsel %vm220, %v217, %v219
      %v222 = vsel %vm220, %v215, %v217
      %v223 = vsel %vm220, %v219, %v215
      %224 = vrot.lane.b32.xlu0 %v199, 17
      %v225 = vpop.permute.xlu0 %224
      %226 = vrot.lane.b32.xlu0 %v200, 17
      %v227 = vpop.permute.xlu0 %226
      %228 = vrot.lane.b32.xlu0 %v201, 17
      %v229 = vpop.permute.xlu0 %228
      %vm230 = vcmp.lt.s32.totalorder %v209, 17
      %v231 = vsel %vm230, %v227, %v229
      %v232 = vsel %vm230, %v225, %v227
      %v233 = vsel %vm230, %v229, %v225
      %234 = vrot.lane.b32.xlu0 %v199, 1
      %v235 = vpop.permute.xlu0 %234
      %236 = vrot.lane.b32.xlu0 %v200, 1
      %v237 = vpop.permute.xlu0 %236
      %238 = vrot.lane.b32.xlu0 %v201, 1
      %v239 = vpop.permute.xlu0 %238
      %vm240 = vcmp.lt.s32.totalorder %v209, 1
      %v241 = vsel %vm240, %v237, %v239
      %v242 = vsel %vm240, %v235, %v237
      %v243 = vsel %vm240, %v239, %v235
      %244 = vrot.lane.b32.xlu0 %v199, 127
      %v245 = vpop.permute.xlu0 %244
      %246 = vrot.lane.b32.xlu0 %v200, 127
      %v247 = vpop.permute.xlu0 %246
      %248 = vrot.lane.b32.xlu0 %v201, 127
      %v249 = vpop.permute.xlu0 %248
      %vm250 = vcmp.lt.s32.totalorder %v209, 127
      %v251 = vsel %vm250, %v247, %v249
      %v252 = vsel %vm250, %v245, %v247
      %v253 = vsel %vm250, %v249, %v245
      %254 = vrot.lane.b32.xlu0 %v199, 111
      %v255 = vpop.permute.xlu0 %254
      %256 = vrot.lane.b32.xlu0 %v200, 111
      %v257 = vpop.permute.xlu0 %256
      %258 = vrot.lane.b32.xlu0 %v201, 111
      %v259 = vpop.permute.xlu0 %258
      %vm260 = vcmp.lt.s32.totalorder %v209, 111
      %v261 = vsel %vm260, %v257, %v259
      %v262 = vsel %vm260, %v255, %v257
      %v263 = vsel %vm260, %v259, %v255
      %264 = vrot.lane.b32.xlu0 %v199, 110
      %v265 = vpop.permute.xlu0 %264
      %266 = vrot.lane.b32.xlu0 %v200, 110
      %v267 = vpop.permute.xlu0 %266
      %268 = vrot.lane.b32.xlu0 %v201, 110
      %v269 = vpop.permute.xlu0 %268
      %vm270 = vcmp.lt.s32.totalorder %v209, 110
      %v271 = vsel %vm270, %v267, %v269
      %v272 = vsel %vm270, %v265, %v267
      %v273 = vsel %vm270, %v269, %v265
      %274 = vrot.lane.b32.xlu0 %v199, 109
      %v275 = vpop.permute.xlu0 %274
      %276 = vrot.lane.b32.xlu0 %v200, 109
      %v277 = vpop.permute.xlu0 %276
      %278 = vrot.lane.b32.xlu0 %v201, 109
      %v279 = vpop.permute.xlu0 %278
      %vm280 = vcmp.lt.s32.totalorder %v209, 109
      %v281 = vsel %vm280, %v277, %v279
      %v282 = vsel %vm280, %v275, %v277
      %v283 = vsel %vm280, %v279, %v275
      %v284 = vld [vmem:[%s2] sm:$0xff]
      %v285 = vld [vmem:[%s3] sm:$0xff]
      %287 = vset.pattern.permute.xlu0 0
      %288 = vperm.xlu0 %287, %v285
      %v289 = vpop.permute.xlu0 %288
      %vm291 = vcmask 588800
      %v293 = vsel %vm291, %v284, 0
      %295 = vmatprep.subr.mxu0 %v212
      %296 = vmatpush1.msra.mxu0 %v213
      %297 = vmatprep.subr.mxu0 %v222
      %298 = vmatpush1.msra.mxu0 %v223
      %299 = vmatprep.subr.mxu0 %v232
      %300 = vmatpush1.msra.mxu0 %v233
      %301 = vmatprep.subr.mxu0 %v242
      %302 = vmatpush1.msra.mxu0 %v243
      %303 = vmatprep.subr.mxu0 %v200
      %304 = vmatpush1.msra.mxu0 %v199
      %305 = vmatprep.subr.mxu0 %v251
      %306 = vmatpush1.msra.mxu0 %v252
      %307 = vmatprep.subr.mxu0 %v261
      %308 = vmatpush1.msra.mxu0 %v262
      %309 = vmatprep.subr.mxu0 %v271
      %310 = vmatpush1.msra.mxu0 %v272
      %311 = vmatprep.subr.mxu0 %v281
      %312 = vmatpush1.msra.mxu0 %v282
      %313 = vmatprep.subr.mxu0 0.0
      %314 = vmatpush1.msra.mxu0 0.0
      %315 = vmatprep.subr.mxu0 0.0
      %316 = vmatpush1.msra.mxu0 0.0
      %317 = vmatprep.subr.mxu0 0.0
      %318 = vmatpush1.msra.mxu0 0.0
      %319 = vmatprep.subr.mxu0 0.0
      %320 = vmatpush1.msra.mxu0 0.0
      %321 = vmatprep.subr.mxu0 0.0
      %322 = vmatpush1.msra.mxu0 0.0
      %323 = vmatprep.subr.mxu0 0.0
      %324 = vmatpush1.msra.mxu0 0.0
      %325 = vmatprep.subr.mxu0 0.0
      %326 = vmatpush1.msra.mxu0 0.0
      %327 = vmatprep.subr.mxu0 0.0
      %328 = vmatpush1.msra.mxu0 0.0
      %329 = vmatprep.subr.mxu0 0.0
      %330 = vmatpush1.msra.mxu0 0.0
      %331 = vmatprep.subr.mxu0 0.0
      %332 = vmatpush1.msra.mxu0 0.0
      %333 = vmatprep.subr.mxu0 0.0
      %334 = vmatpush1.msra.mxu0 0.0
      %335 = vmatprep.subr.mxu0 0.0
      %336 = vmatpush1.msra.mxu0 0.0
      %337 = vmatprep.subr.mxu0 0.0
      %338 = vmatpush1.msra.mxu0 0.0
      %339 = vmatprep.subr.mxu0 0.0
      %340 = vmatpush1.msra.mxu0 0.0
      %341 = vmatprep.subr.mxu0 0.0
      %342 = vmatpush1.msra.mxu0 0.0
      %343 = vmatprep.subr.mxu0 0.0
      %344 = vmatpush1.msra.mxu0 0.0
      %345 = vmatprep.subr.mxu0 0.0
      %346 = vmatpush1.msra.mxu0 0.0
      %347 = vmatprep.subr.mxu0 0.0
      %348 = vmatpush1.msra.mxu0 0.0
      %349 = vmatprep.subr.mxu0 0.0
      %350 = vmatpush1.msra.mxu0 0.0
      %351 = vmatprep.subr.mxu0 0.0
      %352 = vmatpush1.msra.mxu0 0.0
      %353 = vmatprep.subr.mxu0 0.0
      %354 = vmatpush1.msra.mxu0 0.0
      %355 = vmatprep.subr.mxu0 0.0
      %356 = vmatpush1.msra.mxu0 0.0
      %357 = vmatprep.subr.mxu0 0.0
      %358 = vmatpush1.msra.mxu0 0.0
      %359 = vmatprep.mubr.f32.mxu0 0.0
      %360 = vmatmul.mubr.f32.gmra.mrb[0].mxu0 %v293
      %v361 = vpop.f32.mrb[0].mxu0
      %v362 = vadd.f32 %v289, %v361
      %v363 = vpop.f32.mrb[0].mxu0
      %v364 = vadd.f32 %v289, %v363
      %365 = vdwg.mxu0
      %366 = vmatprep.subr.mxu0 0.0
      %367 = vmatpush1.msra.mxu0 %v211
      %368 = vmatprep.subr.mxu0 0.0
      %369 = vmatpush1.msra.mxu0 %v221
      %370 = vmatprep.subr.mxu0 0.0
      %371 = vmatpush1.msra.mxu0 %v231
      %372 = vmatprep.subr.mxu0 0.0
      %373 = vmatpush1.msra.mxu0 %v241
      %374 = vmatprep.subr.mxu0 0.0
      %375 = vmatpush1.msra.mxu0 %v201
      %376 = vmatprep.subr.mxu0 0.0
      %377 = vmatpush1.msra.mxu0 %v253
      %378 = vmatprep.subr.mxu0 0.0
      %379 = vmatpush1.msra.mxu0 %v263
      %380 = vmatprep.subr.mxu0 0.0
      %381 = vmatpush1.msra.mxu0 %v273
      %382 = vmatprep.subr.mxu0 0.0
      %383 = vmatpush1.msra.mxu0 %v283
      %384 = vmatprep.subr.mxu0 0.0
      %385 = vmatpush1.msra.mxu0 0.0
      %386 = vmatprep.subr.mxu0 0.0
      %387 = vmatpush1.msra.mxu0 0.0
      %388 = vmatprep.subr.mxu0 0.0
      %389 = vmatpush1.msra.mxu0 0.0
      %390 = vmatprep.subr.mxu0 0.0
      %391 = vmatpush1.msra.mxu0 0.0
      %392 = vmatprep.subr.mxu0 0.0
      %393 = vmatpush1.msra.mxu0 0.0
      %394 = vmatprep.subr.mxu0 0.0
      %395 = vmatpush1.msra.mxu0 0.0
      %396 = vmatprep.subr.mxu0 0.0
      %397 = vmatpush1.msra.mxu0 0.0
      %398 = vmatprep.subr.mxu0 0.0
      %399 = vmatpush1.msra.mxu0 0.0
      %400 = vmatprep.subr.mxu0 0.0
      %401 = vmatpush1.msra.mxu0 0.0
      %402 = vmatprep.subr.mxu0 0.0
      %403 = vmatpush1.msra.mxu0 0.0
      %404 = vmatprep.subr.mxu0 0.0
      %405 = vmatpush1.msra.mxu0 0.0
      %406 = vmatprep.subr.mxu0 0.0
      %407 = vmatpush1.msra.mxu0 0.0
      %408 = vmatprep.subr.mxu0 0.0
      %409 = vmatpush1.msra.mxu0 0.0
      %410 = vmatprep.subr.mxu0 0.0
      %411 = vmatpush1.msra.mxu0 0.0
      %412 = vmatprep.subr.mxu0 0.0
      %413 = vmatpush1.msra.mxu0 0.0
      %414 = vmatprep.subr.mxu0 0.0
      %415 = vmatpush1.msra.mxu0 0.0
      %416 = vmatprep.subr.mxu0 0.0
      %417 = vmatpush1.msra.mxu0 0.0
      %418 = vmatprep.subr.mxu0 0.0
      %419 = vmatpush1.msra.mxu0 0.0
      %420 = vmatprep.subr.mxu0 0.0
      %421 = vmatpush1.msra.mxu0 0.0
      %422 = vmatprep.subr.mxu0 0.0
      %423 = vmatpush1.msra.mxu0 0.0
      %424 = vmatprep.subr.mxu0 0.0
      %425 = vmatpush1.msra.mxu0 0.0
      %426 = vmatprep.subr.mxu0 0.0
      %427 = vmatpush1.msra.mxu0 0.0
      %428 = vmatprep.subr.mxu0 0.0
      %429 = vmatpush1.msra.mxu0 0.0
      %430 = vmatprep.mubr.f32.mxu0 0.0
      %431 = vmatmul.mubr.f32.gmra.mrb[0].mxu0 %v293
      %v432 = vpop.f32.mrb[0].mxu0
      %v433 = vadd.f32 %v289, %v432
      %v434 = vpop.f32.mrb[0].mxu0
      %435 = vdwg.mxu0
      %v436 = vmax.f32 %v362, 0.0
      %v437 = vmax.f32 %v364, 0.0
      %v438 = vmax.f32 %v433, 0.0
      %v440 = vlaneseq
      %v441 = vshrl.u32 %v440, 7
      %v442 = vsub.s32 0, %v441
      %v443 = vrot.slane %v198, %v442
      %v444 = vlaneseq
      %v445 = vshrl.u32 %v444, 7
      %v446 = vsub.s32 1, %v445
      %v447 = vrot.slane %v198, %v446
      %v448 = vlaneseq
      %v449 = vshrl.u32 %v448, 7
      %v450 = vsub.s32 2, %v449
      %v451 = vrot.slane %v198, %v450
      %v455 = vmul.f32 %v436, %v443
      %v456 = vmul.f32 %v437, %v447
      %v457 = vmul.f32 %v438, %v451
      %458 = vrot.lane.b32.xlu0 %v455, 19
      %v459 = vpop.permute.xlu0 %458
      %460 = vrot.lane.b32.xlu0 %v456, 19
      %v461 = vpop.permute.xlu0 %460
      %462 = vrot.lane.b32.xlu0 %v457, 19
      %v463 = vpop.permute.xlu0 %462
      %v464 = vsel %vm210, %v461, %v463
      %v465 = vsel %vm210, %v459, %v461
      %v466 = vsel %vm210, %v463, %v459
      %467 = vrot.lane.b32.xlu0 %v455, 18
      %v468 = vpop.permute.xlu0 %467
      %469 = vrot.lane.b32.xlu0 %v456, 18
      %v470 = vpop.permute.xlu0 %469
      %471 = vrot.lane.b32.xlu0 %v457, 18
      %v472 = vpop.permute.xlu0 %471
      %v473 = vsel %vm220, %v470, %v472
      %v474 = vsel %vm220, %v468, %v470
      %v475 = vsel %vm220, %v472, %v468
      %476 = vrot.lane.b32.xlu0 %v455, 17
      %v477 = vpop.permute.xlu0 %476
      %478 = vrot.lane.b32.xlu0 %v456, 17
      %v479 = vpop.permute.xlu0 %478
      %480 = vrot.lane.b32.xlu0 %v457, 17
      %v481 = vpop.permute.xlu0 %480
      %v482 = vsel %vm230, %v479, %v481
      %v483 = vsel %vm230, %v477, %v479
      %v484 = vsel %vm230, %v481, %v477
      %485 = vrot.lane.b32.xlu0 %v455, 1
      %v486 = vpop.permute.xlu0 %485
      %487 = vrot.lane.b32.xlu0 %v456, 1
      %v488 = vpop.permute.xlu0 %487
      %489 = vrot.lane.b32.xlu0 %v457, 1
      %v490 = vpop.permute.xlu0 %489
      %v491 = vsel %vm240, %v488, %v490
      %v492 = vsel %vm240, %v486, %v488
      %v493 = vsel %vm240, %v490, %v486
      %494 = vrot.lane.b32.xlu0 %v455, 127
      %v495 = vpop.permute.xlu0 %494
      %496 = vrot.lane.b32.xlu0 %v456, 127
      %v497 = vpop.permute.xlu0 %496
      %498 = vrot.lane.b32.xlu0 %v457, 127
      %v499 = vpop.permute.xlu0 %498
      %v500 = vsel %vm250, %v497, %v499
      %v501 = vsel %vm250, %v495, %v497
      %v502 = vsel %vm250, %v499, %v495
      %503 = vrot.lane.b32.xlu0 %v455, 111
      %v504 = vpop.permute.xlu0 %503
      %505 = vrot.lane.b32.xlu0 %v456, 111
      %v506 = vpop.permute.xlu0 %505
      %507 = vrot.lane.b32.xlu0 %v457, 111
      %v508 = vpop.permute.xlu0 %507
      %v509 = vsel %vm260, %v506, %v508
      %v510 = vsel %vm260, %v504, %v506
      %v511 = vsel %vm260, %v508, %v504
      %512 = vrot.lane.b32.xlu0 %v455, 110
      %v513 = vpop.permute.xlu0 %512
      %514 = vrot.lane.b32.xlu0 %v456, 110
      %v515 = vpop.permute.xlu0 %514
      %516 = vrot.lane.b32.xlu0 %v457, 110
      %v517 = vpop.permute.xlu0 %516
      %v518 = vsel %vm270, %v515, %v517
      %v519 = vsel %vm270, %v513, %v515
      %v520 = vsel %vm270, %v517, %v513
      %521 = vrot.lane.b32.xlu0 %v455, 109
      %v522 = vpop.permute.xlu0 %521
      %523 = vrot.lane.b32.xlu0 %v456, 109
      %v524 = vpop.permute.xlu0 %523
      %525 = vrot.lane.b32.xlu0 %v457, 109
      %v526 = vpop.permute.xlu0 %525
      %v527 = vsel %vm280, %v524, %v526
      %v528 = vsel %vm280, %v522, %v524
      %v529 = vsel %vm280, %v526, %v522
      %s530 = scalar_lea.vmem %s2, 8
      %v531 = vld [vmem:[%s530] sm:$0xff]
      %s532 = scalar_lea.vmem %s3, 8
      %v533 = vld [vmem:[%s532] sm:$0xff]
      %535 = vset.pattern.permute.xlu0 0
      %536 = vperm.xlu0 %535, %v533
      %v537 = vpop.permute.xlu0 %536
      %v540 = vsel %vm291, %v531, 0
      %542 = vmatprep.subr.mxu0 %v465
      %543 = vmatpush1.msra.mxu0 %v466
      %544 = vmatprep.subr.mxu0 %v474
      %545 = vmatpush1.msra.mxu0 %v475
      %546 = vmatprep.subr.mxu0 %v483
      %547 = vmatpush1.msra.mxu0 %v484
      %548 = vmatprep.subr.mxu0 %v492
      %549 = vmatpush1.msra.mxu0 %v493
      %550 = vmatprep.subr.mxu0 %v456
      %551 = vmatpush1.msra.mxu0 %v455
      %552 = vmatprep.subr.mxu0 %v500
      %553 = vmatpush1.msra.mxu0 %v501
      %554 = vmatprep.subr.mxu0 %v509
      %555 = vmatpush1.msra.mxu0 %v510
      %556 = vmatprep.subr.mxu0 %v518
      %557 = vmatpush1.msra.mxu0 %v519
      %558 = vmatprep.subr.mxu0 %v527
      %559 = vmatpush1.msra.mxu0 %v528
      %560 = vmatprep.subr.mxu0 0.0
      %561 = vmatpush1.msra.mxu0 0.0
      %562 = vmatprep.subr.mxu0 0.0
      %563 = vmatpush1.msra.mxu0 0.0
      %564 = vmatprep.subr.mxu0 0.0
      %565 = vmatpush1.msra.mxu0 0.0
      %566 = vmatprep.subr.mxu0 0.0
      %567 = vmatpush1.msra.mxu0 0.0
      %568 = vmatprep.subr.mxu0 0.0
      %569 = vmatpush1.msra.mxu0 0.0
      %570 = vmatprep.subr.mxu0 0.0
      %571 = vmatpush1.msra.mxu0 0.0
      %572 = vmatprep.subr.mxu0 0.0
      %573 = vmatpush1.msra.mxu0 0.0
      %574 = vmatprep.subr.mxu0 0.0
      %575 = vmatpush1.msra.mxu0 0.0
      %576 = vmatprep.subr.mxu0 0.0
      %577 = vmatpush1.msra.mxu0 0.0
      %578 = vmatprep.subr.mxu0 0.0
      %579 = vmatpush1.msra.mxu0 0.0
      %580 = vmatprep.subr.mxu0 0.0
      %581 = vmatpush1.msra.mxu0 0.0
      %582 = vmatprep.subr.mxu0 0.0
      %583 = vmatpush1.msra.mxu0 0.0
      %584 = vmatprep.subr.mxu0 0.0
      %585 = vmatpush1.msra.mxu0 0.0
      %586 = vmatprep.subr.mxu0 0.0
      %587 = vmatpush1.msra.mxu0 0.0
      %588 = vmatprep.subr.mxu0 0.0
      %589 = vmatpush1.msra.mxu0 0.0
      %590 = vmatprep.subr.mxu0 0.0
      %591 = vmatpush1.msra.mxu0 0.0
      %592 = vmatprep.subr.mxu0 0.0
      %593 = vmatpush1.msra.mxu0 0.0
      %594 = vmatprep.subr.mxu0 0.0
      %595 = vmatpush1.msra.mxu0 0.0
      %596 = vmatprep.subr.mxu0 0.0
      %597 = vmatpush1.msra.mxu0 0.0
      %598 = vmatprep.subr.mxu0 0.0
      %599 = vmatpush1.msra.mxu0 0.0
      %600 = vmatprep.subr.mxu0 0.0
      %601 = vmatpush1.msra.mxu0 0.0
      %602 = vmatprep.subr.mxu0 0.0
      %603 = vmatpush1.msra.mxu0 0.0
      %604 = vmatprep.subr.mxu0 0.0
      %605 = vmatpush1.msra.mxu0 0.0
      %606 = vmatprep.mubr.f32.mxu0 0.0
      %607 = vmatmul.mubr.f32.gmra.mrb[0].mxu0 %v540
      %v608 = vpop.f32.mrb[0].mxu0
      %v609 = vadd.f32 %v537, %v608
      %v610 = vpop.f32.mrb[0].mxu0
      %v611 = vadd.f32 %v537, %v610
      %612 = vdwg.mxu0
      %613 = vmatprep.subr.mxu0 0.0
      %614 = vmatpush1.msra.mxu0 %v464
      %615 = vmatprep.subr.mxu0 0.0
      %616 = vmatpush1.msra.mxu0 %v473
      %617 = vmatprep.subr.mxu0 0.0
      %618 = vmatpush1.msra.mxu0 %v482
      %619 = vmatprep.subr.mxu0 0.0
      %620 = vmatpush1.msra.mxu0 %v491
      %621 = vmatprep.subr.mxu0 0.0
      %622 = vmatpush1.msra.mxu0 %v457
      %623 = vmatprep.subr.mxu0 0.0
      %624 = vmatpush1.msra.mxu0 %v502
      %625 = vmatprep.subr.mxu0 0.0
      %626 = vmatpush1.msra.mxu0 %v511
      %627 = vmatprep.subr.mxu0 0.0
      %628 = vmatpush1.msra.mxu0 %v520
      %629 = vmatprep.subr.mxu0 0.0
      %630 = vmatpush1.msra.mxu0 %v529
      %631 = vmatprep.subr.mxu0 0.0
      %632 = vmatpush1.msra.mxu0 0.0
      %633 = vmatprep.subr.mxu0 0.0
      %634 = vmatpush1.msra.mxu0 0.0
      %635 = vmatprep.subr.mxu0 0.0
      %636 = vmatpush1.msra.mxu0 0.0
      %637 = vmatprep.subr.mxu0 0.0
      %638 = vmatpush1.msra.mxu0 0.0
      %639 = vmatprep.subr.mxu0 0.0
      %640 = vmatpush1.msra.mxu0 0.0
      %641 = vmatprep.subr.mxu0 0.0
      %642 = vmatpush1.msra.mxu0 0.0
      %643 = vmatprep.subr.mxu0 0.0
      %644 = vmatpush1.msra.mxu0 0.0
      %645 = vmatprep.subr.mxu0 0.0
      %646 = vmatpush1.msra.mxu0 0.0
      %647 = vmatprep.subr.mxu0 0.0
      %648 = vmatpush1.msra.mxu0 0.0
      %649 = vmatprep.subr.mxu0 0.0
      %650 = vmatpush1.msra.mxu0 0.0
      %651 = vmatprep.subr.mxu0 0.0
      %652 = vmatpush1.msra.mxu0 0.0
      %653 = vmatprep.subr.mxu0 0.0
      %654 = vmatpush1.msra.mxu0 0.0
      %655 = vmatprep.subr.mxu0 0.0
      %656 = vmatpush1.msra.mxu0 0.0
      %657 = vmatprep.subr.mxu0 0.0
      %658 = vmatpush1.msra.mxu0 0.0
      %659 = vmatprep.subr.mxu0 0.0
      %660 = vmatpush1.msra.mxu0 0.0
      %661 = vmatprep.subr.mxu0 0.0
      %662 = vmatpush1.msra.mxu0 0.0
      %663 = vmatprep.subr.mxu0 0.0
      %664 = vmatpush1.msra.mxu0 0.0
      %665 = vmatprep.subr.mxu0 0.0
      %666 = vmatpush1.msra.mxu0 0.0
      %667 = vmatprep.subr.mxu0 0.0
      %668 = vmatpush1.msra.mxu0 0.0
      %669 = vmatprep.subr.mxu0 0.0
      %670 = vmatpush1.msra.mxu0 0.0
      %671 = vmatprep.subr.mxu0 0.0
      %672 = vmatpush1.msra.mxu0 0.0
      %673 = vmatprep.subr.mxu0 0.0
      %674 = vmatpush1.msra.mxu0 0.0
      %675 = vmatprep.subr.mxu0 0.0
      %676 = vmatpush1.msra.mxu0 0.0
      %677 = vmatprep.mubr.f32.mxu0 0.0
      %678 = vmatmul.mubr.f32.gmra.mrb[0].mxu0 %v540
      %v679 = vpop.f32.mrb[0].mxu0
      %v680 = vadd.f32 %v537, %v679
      %v681 = vpop.f32.mrb[0].mxu0
      %682 = vdwg.mxu0
      %v683 = vmax.f32 %v609, 0.0
      %v684 = vmax.f32 %v611, 0.0
      %v685 = vmax.f32 %v680, 0.0
      %v686 = vmul.f32 %v683, %v443
      %v687 = vmul.f32 %v684, %v447
      %v688 = vmul.f32 %v685, %v451
      %689 = vrot.lane.b32.xlu0 %v686, 19
      %v690 = vpop.permute.xlu0 %689
      %691 = vrot.lane.b32.xlu0 %v687, 19
      %v692 = vpop.permute.xlu0 %691
      %693 = vrot.lane.b32.xlu0 %v688, 19
      %v694 = vpop.permute.xlu0 %693
      %v695 = vsel %vm210, %v692, %v694
      %v696 = vsel %vm210, %v690, %v692
      %v697 = vsel %vm210, %v694, %v690
      %698 = vrot.lane.b32.xlu0 %v686, 18
      %v699 = vpop.permute.xlu0 %698
      %700 = vrot.lane.b32.xlu0 %v687, 18
      %v701 = vpop.permute.xlu0 %700
      %702 = vrot.lane.b32.xlu0 %v688, 18
      %v703 = vpop.permute.xlu0 %702
      %v704 = vsel %vm220, %v701, %v703
      %v705 = vsel %vm220, %v699, %v701
      %v706 = vsel %vm220, %v703, %v699
      %707 = vrot.lane.b32.xlu0 %v686, 17
      %v708 = vpop.permute.xlu0 %707
      %709 = vrot.lane.b32.xlu0 %v687, 17
      %v710 = vpop.permute.xlu0 %709
      %711 = vrot.lane.b32.xlu0 %v688, 17
      %v712 = vpop.permute.xlu0 %711
      %v713 = vsel %vm230, %v710, %v712
      %v714 = vsel %vm230, %v708, %v710
      %v715 = vsel %vm230, %v712, %v708
      %716 = vrot.lane.b32.xlu0 %v686, 1
      %v717 = vpop.permute.xlu0 %716
      %718 = vrot.lane.b32.xlu0 %v687, 1
      %v719 = vpop.permute.xlu0 %718
      %720 = vrot.lane.b32.xlu0 %v688, 1
      %v721 = vpop.permute.xlu0 %720
      %v722 = vsel %vm240, %v719, %v721
      %v723 = vsel %vm240, %v717, %v719
      %v724 = vsel %vm240, %v721, %v717
      %725 = vrot.lane.b32.xlu0 %v686, 127
      %v726 = vpop.permute.xlu0 %725
      %727 = vrot.lane.b32.xlu0 %v687, 127
      %v728 = vpop.permute.xlu0 %727
      %729 = vrot.lane.b32.xlu0 %v688, 127
      %v730 = vpop.permute.xlu0 %729
      %v731 = vsel %vm250, %v728, %v730
      %v732 = vsel %vm250, %v726, %v728
      %v733 = vsel %vm250, %v730, %v726
      %734 = vrot.lane.b32.xlu0 %v686, 111
      %v735 = vpop.permute.xlu0 %734
      %736 = vrot.lane.b32.xlu0 %v687, 111
      %v737 = vpop.permute.xlu0 %736
      %738 = vrot.lane.b32.xlu0 %v688, 111
      %v739 = vpop.permute.xlu0 %738
      %v740 = vsel %vm260, %v737, %v739
      %v741 = vsel %vm260, %v735, %v737
      %v742 = vsel %vm260, %v739, %v735
      %743 = vrot.lane.b32.xlu0 %v686, 110
      %v744 = vpop.permute.xlu0 %743
      %745 = vrot.lane.b32.xlu0 %v687, 110
      %v746 = vpop.permute.xlu0 %745
      %747 = vrot.lane.b32.xlu0 %v688, 110
      %v748 = vpop.permute.xlu0 %747
      %v749 = vsel %vm270, %v746, %v748
      %v750 = vsel %vm270, %v744, %v746
      %v751 = vsel %vm270, %v748, %v744
      %752 = vrot.lane.b32.xlu0 %v686, 109
      %v753 = vpop.permute.xlu0 %752
      %754 = vrot.lane.b32.xlu0 %v687, 109
      %v755 = vpop.permute.xlu0 %754
      %756 = vrot.lane.b32.xlu0 %v688, 109
      %v757 = vpop.permute.xlu0 %756
      %v758 = vsel %vm280, %v755, %v757
      %v759 = vsel %vm280, %v753, %v755
      %v760 = vsel %vm280, %v757, %v753
      %s761 = scalar_lea.vmem %s2, 16
      %v762 = vld [vmem:[%s761] sm:$0xff]
      %s763 = scalar_lea.vmem %s3, 16
      %v764 = vld [vmem:[%s763] sm:$0xff]
      %766 = vset.pattern.permute.xlu0 0
      %767 = vperm.xlu0 %766, %v764
      %v768 = vpop.permute.xlu0 %767
      %v771 = vsel %vm291, %v762, 0
      %773 = vmatprep.subr.mxu0 %v696
      %774 = vmatpush1.msra.mxu0 %v697
      %775 = vmatprep.subr.mxu0 %v705
      %776 = vmatpush1.msra.mxu0 %v706
      %777 = vmatprep.subr.mxu0 %v714
      %778 = vmatpush1.msra.mxu0 %v715
      %779 = vmatprep.subr.mxu0 %v723
      %780 = vmatpush1.msra.mxu0 %v724
      %781 = vmatprep.subr.mxu0 %v687
      %782 = vmatpush1.msra.mxu0 %v686
      %783 = vmatprep.subr.mxu0 %v731
      %784 = vmatpush1.msra.mxu0 %v732
      %785 = vmatprep.subr.mxu0 %v740
      %786 = vmatpush1.msra.mxu0 %v741
      %787 = vmatprep.subr.mxu0 %v749
      %788 = vmatpush1.msra.mxu0 %v750
      %789 = vmatprep.subr.mxu0 %v758
      %790 = vmatpush1.msra.mxu0 %v759
      %791 = vmatprep.subr.mxu0 0.0
      %792 = vmatpush1.msra.mxu0 0.0
      %793 = vmatprep.subr.mxu0 0.0
      %794 = vmatpush1.msra.mxu0 0.0
      %795 = vmatprep.subr.mxu0 0.0
      %796 = vmatpush1.msra.mxu0 0.0
      %797 = vmatprep.subr.mxu0 0.0
      %798 = vmatpush1.msra.mxu0 0.0
      %799 = vmatprep.subr.mxu0 0.0
      %800 = vmatpush1.msra.mxu0 0.0
      %801 = vmatprep.subr.mxu0 0.0
      %802 = vmatpush1.msra.mxu0 0.0
      %803 = vmatprep.subr.mxu0 0.0
      %804 = vmatpush1.msra.mxu0 0.0
      %805 = vmatprep.subr.mxu0 0.0
      %806 = vmatpush1.msra.mxu0 0.0
      %807 = vmatprep.subr.mxu0 0.0
      %808 = vmatpush1.msra.mxu0 0.0
      %809 = vmatprep.subr.mxu0 0.0
      %810 = vmatpush1.msra.mxu0 0.0
      %811 = vmatprep.subr.mxu0 0.0
      %812 = vmatpush1.msra.mxu0 0.0
      %813 = vmatprep.subr.mxu0 0.0
      %814 = vmatpush1.msra.mxu0 0.0
      %815 = vmatprep.subr.mxu0 0.0
      %816 = vmatpush1.msra.mxu0 0.0
      %817 = vmatprep.subr.mxu0 0.0
      %818 = vmatpush1.msra.mxu0 0.0
      %819 = vmatprep.subr.mxu0 0.0
      %820 = vmatpush1.msra.mxu0 0.0
      %821 = vmatprep.subr.mxu0 0.0
      %822 = vmatpush1.msra.mxu0 0.0
      %823 = vmatprep.subr.mxu0 0.0
      %824 = vmatpush1.msra.mxu0 0.0
      %825 = vmatprep.subr.mxu0 0.0
      %826 = vmatpush1.msra.mxu0 0.0
      %827 = vmatprep.subr.mxu0 0.0
      %828 = vmatpush1.msra.mxu0 0.0
      %829 = vmatprep.subr.mxu0 0.0
      %830 = vmatpush1.msra.mxu0 0.0
      %831 = vmatprep.subr.mxu0 0.0
      %832 = vmatpush1.msra.mxu0 0.0
      %833 = vmatprep.subr.mxu0 0.0
      %834 = vmatpush1.msra.mxu0 0.0
      %835 = vmatprep.subr.mxu0 0.0
      %836 = vmatpush1.msra.mxu0 0.0
      %837 = vmatprep.mubr.f32.mxu0 0.0
      %838 = vmatmul.mubr.f32.gmra.mrb[0].mxu0 %v771
      %v839 = vpop.f32.mrb[0].mxu0
      %v840 = vadd.f32 %v768, %v839
      %v841 = vpop.f32.mrb[0].mxu0
      %v842 = vadd.f32 %v768, %v841
      %843 = vdwg.mxu0
      %844 = vmatprep.subr.mxu0 0.0
      %845 = vmatpush1.msra.mxu0 %v695
      %846 = vmatprep.subr.mxu0 0.0
      %847 = vmatpush1.msra.mxu0 %v704
      %848 = vmatprep.subr.mxu0 0.0
      %849 = vmatpush1.msra.mxu0 %v713
      %850 = vmatprep.subr.mxu0 0.0
      %851 = vmatpush1.msra.mxu0 %v722
      %852 = vmatprep.subr.mxu0 0.0
      %853 = vmatpush1.msra.mxu0 %v688
      %854 = vmatprep.subr.mxu0 0.0
      %855 = vmatpush1.msra.mxu0 %v733
      %856 = vmatprep.subr.mxu0 0.0
      %857 = vmatpush1.msra.mxu0 %v742
      %858 = vmatprep.subr.mxu0 0.0
      %859 = vmatpush1.msra.mxu0 %v751
      %860 = vmatprep.subr.mxu0 0.0
      %861 = vmatpush1.msra.mxu0 %v760
      %862 = vmatprep.subr.mxu0 0.0
      %863 = vmatpush1.msra.mxu0 0.0
      %864 = vmatprep.subr.mxu0 0.0
      %865 = vmatpush1.msra.mxu0 0.0
      %866 = vmatprep.subr.mxu0 0.0
      %867 = vmatpush1.msra.mxu0 0.0
      %868 = vmatprep.subr.mxu0 0.0
      %869 = vmatpush1.msra.mxu0 0.0
      %870 = vmatprep.subr.mxu0 0.0
      %871 = vmatpush1.msra.mxu0 0.0
      %872 = vmatprep.subr.mxu0 0.0
      %873 = vmatpush1.msra.mxu0 0.0
      %874 = vmatprep.subr.mxu0 0.0
      %875 = vmatpush1.msra.mxu0 0.0
      %876 = vmatprep.subr.mxu0 0.0
      %877 = vmatpush1.msra.mxu0 0.0
      %878 = vmatprep.subr.mxu0 0.0
      %879 = vmatpush1.msra.mxu0 0.0
      %880 = vmatprep.subr.mxu0 0.0
      %881 = vmatpush1.msra.mxu0 0.0
      %882 = vmatprep.subr.mxu0 0.0
      %883 = vmatpush1.msra.mxu0 0.0
      %884 = vmatprep.subr.mxu0 0.0
      %885 = vmatpush1.msra.mxu0 0.0
      %886 = vmatprep.subr.mxu0 0.0
      %887 = vmatpush1.msra.mxu0 0.0
      %888 = vmatprep.subr.mxu0 0.0
      %889 = vmatpush1.msra.mxu0 0.0
      %890 = vmatprep.subr.mxu0 0.0
      %891 = vmatpush1.msra.mxu0 0.0
      %892 = vmatprep.subr.mxu0 0.0
      %893 = vmatpush1.msra.mxu0 0.0
      %894 = vmatprep.subr.mxu0 0.0
      %895 = vmatpush1.msra.mxu0 0.0
      %896 = vmatprep.subr.mxu0 0.0
      %897 = vmatpush1.msra.mxu0 0.0
      %898 = vmatprep.subr.mxu0 0.0
      %899 = vmatpush1.msra.mxu0 0.0
      %900 = vmatprep.subr.mxu0 0.0
      %901 = vmatpush1.msra.mxu0 0.0
      %902 = vmatprep.subr.mxu0 0.0
      %903 = vmatpush1.msra.mxu0 0.0
      %904 = vmatprep.subr.mxu0 0.0
      %905 = vmatpush1.msra.mxu0 0.0
      %906 = vmatprep.subr.mxu0 0.0
      %907 = vmatpush1.msra.mxu0 0.0
      %908 = vmatprep.mubr.f32.mxu0 0.0
      %909 = vmatmul.mubr.f32.gmra.mrb[0].mxu0 %v771
      %v910 = vpop.f32.mrb[0].mxu0
      %v911 = vadd.f32 %v768, %v910
      %v912 = vpop.f32.mrb[0].mxu0
      %913 = vdwg.mxu0
      %v914 = vmul.f32 %v840, %v443
      %v915 = vmul.f32 %v842, %v447
      %v916 = vmul.f32 %v911, %v451
      %v917 = vadd.f32 %v914, %v455
      %v918 = vadd.f32 %v915, %v456
      %v919 = vadd.f32 %v916, %v457
      %920 = vrot.lane.b32.xlu0 %v917, 19
      %v921 = vpop.permute.xlu0 %920
      %922 = vrot.lane.b32.xlu0 %v918, 19
      %v923 = vpop.permute.xlu0 %922
      %924 = vrot.lane.b32.xlu0 %v919, 19
      %v925 = vpop.permute.xlu0 %924
      %v926 = vsel %vm210, %v923, %v925
      %v927 = vsel %vm210, %v921, %v923
      %v928 = vsel %vm210, %v925, %v921
      %929 = vrot.lane.b32.xlu0 %v917, 18
      %v930 = vpop.permute.xlu0 %929
      %931 = vrot.lane.b32.xlu0 %v918, 18
      %v932 = vpop.permute.xlu0 %931
      %933 = vrot.lane.b32.xlu0 %v919, 18
      %v934 = vpop.permute.xlu0 %933
      %v935 = vsel %vm220, %v932, %v934
      %v936 = vsel %vm220, %v930, %v932
      %v937 = vsel %vm220, %v934, %v930
      %938 = vrot.lane.b32.xlu0 %v917, 17
      %v939 = vpop.permute.xlu0 %938
      %940 = vrot.lane.b32.xlu0 %v918, 17
      %v941 = vpop.permute.xlu0 %940
      %942 = vrot.lane.b32.xlu0 %v919, 17
      %v943 = vpop.permute.xlu0 %942
      %v944 = vsel %vm230, %v941, %v943
      %v945 = vsel %vm230, %v939, %v941
      %v946 = vsel %vm230, %v943, %v939
      %947 = vrot.lane.b32.xlu0 %v917, 1
      %v948 = vpop.permute.xlu0 %947
      %949 = vrot.lane.b32.xlu0 %v918, 1
      %v950 = vpop.permute.xlu0 %949
      %951 = vrot.lane.b32.xlu0 %v919, 1
      %v952 = vpop.permute.xlu0 %951
      %v953 = vsel %vm240, %v950, %v952
      %v954 = vsel %vm240, %v948, %v950
      %v955 = vsel %vm240, %v952, %v948
      %956 = vrot.lane.b32.xlu0 %v917, 127
      %v957 = vpop.permute.xlu0 %956
      %958 = vrot.lane.b32.xlu0 %v918, 127
      %v959 = vpop.permute.xlu0 %958
      %960 = vrot.lane.b32.xlu0 %v919, 127
      %v961 = vpop.permute.xlu0 %960
      %v962 = vsel %vm250, %v959, %v961
      %v963 = vsel %vm250, %v957, %v959
      %v964 = vsel %vm250, %v961, %v957
      %965 = vrot.lane.b32.xlu0 %v917, 111
      %v966 = vpop.permute.xlu0 %965
      %967 = vrot.lane.b32.xlu0 %v918, 111
      %v968 = vpop.permute.xlu0 %967
      %969 = vrot.lane.b32.xlu0 %v919, 111
      %v970 = vpop.permute.xlu0 %969
      %v971 = vsel %vm260, %v968, %v970
      %v972 = vsel %vm260, %v966, %v968
      %v973 = vsel %vm260, %v970, %v966
      %974 = vrot.lane.b32.xlu0 %v917, 110
      %v975 = vpop.permute.xlu0 %974
      %976 = vrot.lane.b32.xlu0 %v918, 110
      %v977 = vpop.permute.xlu0 %976
      %978 = vrot.lane.b32.xlu0 %v919, 110
      %v979 = vpop.permute.xlu0 %978
      %v980 = vsel %vm270, %v977, %v979
      %v981 = vsel %vm270, %v975, %v977
      %v982 = vsel %vm270, %v979, %v975
      %983 = vrot.lane.b32.xlu0 %v917, 109
      %v984 = vpop.permute.xlu0 %983
      %985 = vrot.lane.b32.xlu0 %v918, 109
      %v986 = vpop.permute.xlu0 %985
      %987 = vrot.lane.b32.xlu0 %v919, 109
      %v988 = vpop.permute.xlu0 %987
      %v989 = vsel %vm280, %v986, %v988
      %v990 = vsel %vm280, %v984, %v986
      %v991 = vsel %vm280, %v988, %v984
      %s992 = scalar_lea.vmem %s2, 24
      %v993 = vld [vmem:[%s992] sm:$0xff]
      %s994 = scalar_lea.vmem %s3, 24
      %v995 = vld [vmem:[%s994] sm:$0xff]
      %997 = vset.pattern.permute.xlu0 0
      %998 = vperm.xlu0 %997, %v995
      %v999 = vpop.permute.xlu0 %998
      %v1002 = vsel %vm291, %v993, 0
      %1004 = vmatprep.subr.mxu0 %v927
      %1005 = vmatpush1.msra.mxu0 %v928
      %1006 = vmatprep.subr.mxu0 %v936
      %1007 = vmatpush1.msra.mxu0 %v937
      %1008 = vmatprep.subr.mxu0 %v945
      %1009 = vmatpush1.msra.mxu0 %v946
      %1010 = vmatprep.subr.mxu0 %v954
      %1011 = vmatpush1.msra.mxu0 %v955
      %1012 = vmatprep.subr.mxu0 %v918
      %1013 = vmatpush1.msra.mxu0 %v917
      %1014 = vmatprep.subr.mxu0 %v962
      %1015 = vmatpush1.msra.mxu0 %v963
      %1016 = vmatprep.subr.mxu0 %v971
      %1017 = vmatpush1.msra.mxu0 %v972
      %1018 = vmatprep.subr.mxu0 %v980
      %1019 = vmatpush1.msra.mxu0 %v981
      %1020 = vmatprep.subr.mxu0 %v989
      %1021 = vmatpush1.msra.mxu0 %v990
      %1022 = vmatprep.subr.mxu0 0.0
      %1023 = vmatpush1.msra.mxu0 0.0
      %1024 = vmatprep.subr.mxu0 0.0
      %1025 = vmatpush1.msra.mxu0 0.0
      %1026 = vmatprep.subr.mxu0 0.0
      %1027 = vmatpush1.msra.mxu0 0.0
      %1028 = vmatprep.subr.mxu0 0.0
      %1029 = vmatpush1.msra.mxu0 0.0
      %1030 = vmatprep.subr.mxu0 0.0
      %1031 = vmatpush1.msra.mxu0 0.0
      %1032 = vmatprep.subr.mxu0 0.0
      %1033 = vmatpush1.msra.mxu0 0.0
      %1034 = vmatprep.subr.mxu0 0.0
      %1035 = vmatpush1.msra.mxu0 0.0
      %1036 = vmatprep.subr.mxu0 0.0
      %1037 = vmatpush1.msra.mxu0 0.0
      %1038 = vmatprep.subr.mxu0 0.0
      %1039 = vmatpush1.msra.mxu0 0.0
      %1040 = vmatprep.subr.mxu0 0.0
      %1041 = vmatpush1.msra.mxu0 0.0
      %1042 = vmatprep.subr.mxu0 0.0
      %1043 = vmatpush1.msra.mxu0 0.0
      %1044 = vmatprep.subr.mxu0 0.0
      %1045 = vmatpush1.msra.mxu0 0.0
      %1046 = vmatprep.subr.mxu0 0.0
      %1047 = vmatpush1.msra.mxu0 0.0
      %1048 = vmatprep.subr.mxu0 0.0
      %1049 = vmatpush1.msra.mxu0 0.0
      %1050 = vmatprep.subr.mxu0 0.0
      %1051 = vmatpush1.msra.mxu0 0.0
      %1052 = vmatprep.subr.mxu0 0.0
      %1053 = vmatpush1.msra.mxu0 0.0
      %1054 = vmatprep.subr.mxu0 0.0
      %1055 = vmatpush1.msra.mxu0 0.0
      %1056 = vmatprep.subr.mxu0 0.0
      %1057 = vmatpush1.msra.mxu0 0.0
      %1058 = vmatprep.subr.mxu0 0.0
      %1059 = vmatpush1.msra.mxu0 0.0
      %1060 = vmatprep.subr.mxu0 0.0
      %1061 = vmatpush1.msra.mxu0 0.0
      %1062 = vmatprep.subr.mxu0 0.0
      %1063 = vmatpush1.msra.mxu0 0.0
      %1064 = vmatprep.subr.mxu0 0.0
      %1065 = vmatpush1.msra.mxu0 0.0
      %1066 = vmatprep.subr.mxu0 0.0
      %1067 = vmatpush1.msra.mxu0 0.0
      %1068 = vmatprep.mubr.f32.mxu0 0.0
      %1069 = vmatmul.mubr.f32.gmra.mrb[0].mxu0 %v1002
      %v1070 = vpop.f32.mrb[0].mxu0
      %v1071 = vadd.f32 %v999, %v1070
      %v1072 = vpop.f32.mrb[0].mxu0
      %v1073 = vadd.f32 %v999, %v1072
      %1074 = vdwg.mxu0
      %1075 = vmatprep.subr.mxu0 0.0
      %1076 = vmatpush1.msra.mxu0 %v926
      %1077 = vmatprep.subr.mxu0 0.0
      %1078 = vmatpush1.msra.mxu0 %v935
      %1079 = vmatprep.subr.mxu0 0.0
      %1080 = vmatpush1.msra.mxu0 %v944
      %1081 = vmatprep.subr.mxu0 0.0
      %1082 = vmatpush1.msra.mxu0 %v953
      %1083 = vmatprep.subr.mxu0 0.0
      %1084 = vmatpush1.msra.mxu0 %v919
      %1085 = vmatprep.subr.mxu0 0.0
      %1086 = vmatpush1.msra.mxu0 %v964
      %1087 = vmatprep.subr.mxu0 0.0
      %1088 = vmatpush1.msra.mxu0 %v973
      %1089 = vmatprep.subr.mxu0 0.0
      %1090 = vmatpush1.msra.mxu0 %v982
      %1091 = vmatprep.subr.mxu0 0.0
      %1092 = vmatpush1.msra.mxu0 %v991
      %1093 = vmatprep.subr.mxu0 0.0
      %1094 = vmatpush1.msra.mxu0 0.0
      %1095 = vmatprep.subr.mxu0 0.0
      %1096 = vmatpush1.msra.mxu0 0.0
      %1097 = vmatprep.subr.mxu0 0.0
      %1098 = vmatpush1.msra.mxu0 0.0
      %1099 = vmatprep.subr.mxu0 0.0
      %1100 = vmatpush1.msra.mxu0 0.0
      %1101 = vmatprep.subr.mxu0 0.0
      %1102 = vmatpush1.msra.mxu0 0.0
      %1103 = vmatprep.subr.mxu0 0.0
      %1104 = vmatpush1.msra.mxu0 0.0
      %1105 = vmatprep.subr.mxu0 0.0
      %1106 = vmatpush1.msra.mxu0 0.0
      %1107 = vmatprep.subr.mxu0 0.0
      %1108 = vmatpush1.msra.mxu0 0.0
      %1109 = vmatprep.subr.mxu0 0.0
      %1110 = vmatpush1.msra.mxu0 0.0
      %1111 = vmatprep.subr.mxu0 0.0
      %1112 = vmatpush1.msra.mxu0 0.0
      %1113 = vmatprep.subr.mxu0 0.0
      %1114 = vmatpush1.msra.mxu0 0.0
      %1115 = vmatprep.subr.mxu0 0.0
      %1116 = vmatpush1.msra.mxu0 0.0
      %1117 = vmatprep.subr.mxu0 0.0
      %1118 = vmatpush1.msra.mxu0 0.0
      %1119 = vmatprep.subr.mxu0 0.0
      %1120 = vmatpush1.msra.mxu0 0.0
      %1121 = vmatprep.subr.mxu0 0.0
      %1122 = vmatpush1.msra.mxu0 0.0
      %1123 = vmatprep.subr.mxu0 0.0
      %1124 = vmatpush1.msra.mxu0 0.0
      %1125 = vmatprep.subr.mxu0 0.0
      %1126 = vmatpush1.msra.mxu0 0.0
      %1127 = vmatprep.subr.mxu0 0.0
      %1128 = vmatpush1.msra.mxu0 0.0
      %1129 = vmatprep.subr.mxu0 0.0
      %1130 = vmatpush1.msra.mxu0 0.0
      %1131 = vmatprep.subr.mxu0 0.0
      %1132 = vmatpush1.msra.mxu0 0.0
      %1133 = vmatprep.subr.mxu0 0.0
      %1134 = vmatpush1.msra.mxu0 0.0
      %1135 = vmatprep.subr.mxu0 0.0
      %1136 = vmatpush1.msra.mxu0 0.0
      %1137 = vmatprep.subr.mxu0 0.0
      %1138 = vmatpush1.msra.mxu0 0.0
      %1139 = vmatprep.mubr.f32.mxu0 0.0
      %1140 = vmatmul.mubr.f32.gmra.mrb[0].mxu0 %v1002
      %v1141 = vpop.f32.mrb[0].mxu0
      %v1142 = vadd.f32 %v999, %v1141
      %v1143 = vpop.f32.mrb[0].mxu0
      %1144 = vdwg.mxu0
      %v1145 = vmax.f32 %v1071, 0.0
      %v1146 = vmax.f32 %v1073, 0.0
      %v1147 = vmax.f32 %v1142, 0.0
      %v1148 = vmul.f32 %v1145, %v443
      %v1149 = vmul.f32 %v1146, %v447
      %v1150 = vmul.f32 %v1147, %v451
      %1151 = vrot.lane.b32.xlu0 %v1148, 19
      %v1152 = vpop.permute.xlu0 %1151
      %1153 = vrot.lane.b32.xlu0 %v1149, 19
      %v1154 = vpop.permute.xlu0 %1153
      %1155 = vrot.lane.b32.xlu0 %v1150, 19
      %v1156 = vpop.permute.xlu0 %1155
      %v1157 = vsel %vm210, %v1154, %v1156
      %v1158 = vsel %vm210, %v1152, %v1154
      %v1159 = vsel %vm210, %v1156, %v1152
      %1160 = vrot.lane.b32.xlu0 %v1148, 18
      %v1161 = vpop.permute.xlu0 %1160
      %1162 = vrot.lane.b32.xlu0 %v1149, 18
      %v1163 = vpop.permute.xlu0 %1162
      %1164 = vrot.lane.b32.xlu0 %v1150, 18
      %v1165 = vpop.permute.xlu0 %1164
      %v1166 = vsel %vm220, %v1163, %v1165
      %v1167 = vsel %vm220, %v1161, %v1163
      %v1168 = vsel %vm220, %v1165, %v1161
      %1169 = vrot.lane.b32.xlu0 %v1148, 17
      %v1170 = vpop.permute.xlu0 %1169
      %1171 = vrot.lane.b32.xlu0 %v1149, 17
      %v1172 = vpop.permute.xlu0 %1171
      %1173 = vrot.lane.b32.xlu0 %v1150, 17
      %v1174 = vpop.permute.xlu0 %1173
      %v1175 = vsel %vm230, %v1172, %v1174
      %v1176 = vsel %vm230, %v1170, %v1172
      %v1177 = vsel %vm230, %v1174, %v1170
      %1178 = vrot.lane.b32.xlu0 %v1148, 1
      %v1179 = vpop.permute.xlu0 %1178
      %1180 = vrot.lane.b32.xlu0 %v1149, 1
      %v1181 = vpop.permute.xlu0 %1180
      %1182 = vrot.lane.b32.xlu0 %v1150, 1
      %v1183 = vpop.permute.xlu0 %1182
      %v1184 = vsel %vm240, %v1181, %v1183
      %v1185 = vsel %vm240, %v1179, %v1181
      %v1186 = vsel %vm240, %v1183, %v1179
      %1187 = vrot.lane.b32.xlu0 %v1148, 127
      %v1188 = vpop.permute.xlu0 %1187
      %1189 = vrot.lane.b32.xlu0 %v1149, 127
      %v1190 = vpop.permute.xlu0 %1189
      %1191 = vrot.lane.b32.xlu0 %v1150, 127
      %v1192 = vpop.permute.xlu0 %1191
      %v1193 = vsel %vm250, %v1190, %v1192
      %v1194 = vsel %vm250, %v1188, %v1190
      %v1195 = vsel %vm250, %v1192, %v1188
      %1196 = vrot.lane.b32.xlu0 %v1148, 111
      %v1197 = vpop.permute.xlu0 %1196
      %1198 = vrot.lane.b32.xlu0 %v1149, 111
      %v1199 = vpop.permute.xlu0 %1198
      %1200 = vrot.lane.b32.xlu0 %v1150, 111
      %v1201 = vpop.permute.xlu0 %1200
      %v1202 = vsel %vm260, %v1199, %v1201
      %v1203 = vsel %vm260, %v1197, %v1199
      %v1204 = vsel %vm260, %v1201, %v1197
      %1205 = vrot.lane.b32.xlu0 %v1148, 110
      %v1206 = vpop.permute.xlu0 %1205
      %1207 = vrot.lane.b32.xlu0 %v1149, 110
      %v1208 = vpop.permute.xlu0 %1207
      %1209 = vrot.lane.b32.xlu0 %v1150, 110
      %v1210 = vpop.permute.xlu0 %1209
      %v1211 = vsel %vm270, %v1208, %v1210
      %v1212 = vsel %vm270, %v1206, %v1208
      %v1213 = vsel %vm270, %v1210, %v1206
      %1214 = vrot.lane.b32.xlu0 %v1148, 109
      %v1215 = vpop.permute.xlu0 %1214
      %1216 = vrot.lane.b32.xlu0 %v1149, 109
      %v1217 = vpop.permute.xlu0 %1216
      %1218 = vrot.lane.b32.xlu0 %v1150, 109
      %v1219 = vpop.permute.xlu0 %1218
      %v1220 = vsel %vm280, %v1217, %v1219
      %v1221 = vsel %vm280, %v1215, %v1217
      %v1222 = vsel %vm280, %v1219, %v1215
      %s1223 = scalar_lea.vmem %s2, 32
      %v1224 = vld [vmem:[%s1223] sm:$0xff]
      %s1225 = scalar_lea.vmem %s3, 32
      %v1226 = vld [vmem:[%s1225] sm:$0xff]
      %1228 = vset.pattern.permute.xlu0 0
      %1229 = vperm.xlu0 %1228, %v1226
      %v1230 = vpop.permute.xlu0 %1229
      %v1233 = vsel %vm291, %v1224, 0
      %1235 = vmatprep.subr.mxu0 %v1158
      %1236 = vmatpush1.msra.mxu0 %v1159
      %1237 = vmatprep.subr.mxu0 %v1167
      %1238 = vmatpush1.msra.mxu0 %v1168
      %1239 = vmatprep.subr.mxu0 %v1176
      %1240 = vmatpush1.msra.mxu0 %v1177
      %1241 = vmatprep.subr.mxu0 %v1185
      %1242 = vmatpush1.msra.mxu0 %v1186
      %1243 = vmatprep.subr.mxu0 %v1149
      %1244 = vmatpush1.msra.mxu0 %v1148
      %1245 = vmatprep.subr.mxu0 %v1193
      %1246 = vmatpush1.msra.mxu0 %v1194
      %1247 = vmatprep.subr.mxu0 %v1202
      %1248 = vmatpush1.msra.mxu0 %v1203
      %1249 = vmatprep.subr.mxu0 %v1211
      %1250 = vmatpush1.msra.mxu0 %v1212
      %1251 = vmatprep.subr.mxu0 %v1220
      %1252 = vmatpush1.msra.mxu0 %v1221
      %1253 = vmatprep.subr.mxu0 0.0
      %1254 = vmatpush1.msra.mxu0 0.0
      %1255 = vmatprep.subr.mxu0 0.0
      %1256 = vmatpush1.msra.mxu0 0.0
      %1257 = vmatprep.subr.mxu0 0.0
      %1258 = vmatpush1.msra.mxu0 0.0
      %1259 = vmatprep.subr.mxu0 0.0
      %1260 = vmatpush1.msra.mxu0 0.0
      %1261 = vmatprep.subr.mxu0 0.0
      %1262 = vmatpush1.msra.mxu0 0.0
      %1263 = vmatprep.subr.mxu0 0.0
      %1264 = vmatpush1.msra.mxu0 0.0
      %1265 = vmatprep.subr.mxu0 0.0
      %1266 = vmatpush1.msra.mxu0 0.0
      %1267 = vmatprep.subr.mxu0 0.0
      %1268 = vmatpush1.msra.mxu0 0.0
      %1269 = vmatprep.subr.mxu0 0.0
      %1270 = vmatpush1.msra.mxu0 0.0
      %1271 = vmatprep.subr.mxu0 0.0
      %1272 = vmatpush1.msra.mxu0 0.0
      %1273 = vmatprep.subr.mxu0 0.0
      %1274 = vmatpush1.msra.mxu0 0.0
      %1275 = vmatprep.subr.mxu0 0.0
      %1276 = vmatpush1.msra.mxu0 0.0
      %1277 = vmatprep.subr.mxu0 0.0
      %1278 = vmatpush1.msra.mxu0 0.0
      %1279 = vmatprep.subr.mxu0 0.0
      %1280 = vmatpush1.msra.mxu0 0.0
      %1281 = vmatprep.subr.mxu0 0.0
      %1282 = vmatpush1.msra.mxu0 0.0
      %1283 = vmatprep.subr.mxu0 0.0
      %1284 = vmatpush1.msra.mxu0 0.0
      %1285 = vmatprep.subr.mxu0 0.0
      %1286 = vmatpush1.msra.mxu0 0.0
      %1287 = vmatprep.subr.mxu0 0.0
      %1288 = vmatpush1.msra.mxu0 0.0
      %1289 = vmatprep.subr.mxu0 0.0
      %1290 = vmatpush1.msra.mxu0 0.0
      %1291 = vmatprep.subr.mxu0 0.0
      %1292 = vmatpush1.msra.mxu0 0.0
      %1293 = vmatprep.subr.mxu0 0.0
      %1294 = vmatpush1.msra.mxu0 0.0
      %1295 = vmatprep.subr.mxu0 0.0
      %1296 = vmatpush1.msra.mxu0 0.0
      %1297 = vmatprep.subr.mxu0 0.0
      %1298 = vmatpush1.msra.mxu0 0.0
      %1299 = vmatprep.mubr.f32.mxu0 0.0
      %1300 = vmatmul.mubr.f32.gmra.mrb[0].mxu0 %v1233
      %v1301 = vpop.f32.mrb[0].mxu0
      %v1302 = vadd.f32 %v1230, %v1301
      %v1303 = vpop.f32.mrb[0].mxu0
      %v1304 = vadd.f32 %v1230, %v1303
      %1305 = vdwg.mxu0
      %1306 = vmatprep.subr.mxu0 0.0
      %1307 = vmatpush1.msra.mxu0 %v1157
      %1308 = vmatprep.subr.mxu0 0.0
      %1309 = vmatpush1.msra.mxu0 %v1166
      %1310 = vmatprep.subr.mxu0 0.0
      %1311 = vmatpush1.msra.mxu0 %v1175
      %1312 = vmatprep.subr.mxu0 0.0
      %1313 = vmatpush1.msra.mxu0 %v1184
      %1314 = vmatprep.subr.mxu0 0.0
      %1315 = vmatpush1.msra.mxu0 %v1150
      %1316 = vmatprep.subr.mxu0 0.0
      %1317 = vmatpush1.msra.mxu0 %v1195
      %1318 = vmatprep.subr.mxu0 0.0
      %1319 = vmatpush1.msra.mxu0 %v1204
      %1320 = vmatprep.subr.mxu0 0.0
      %1321 = vmatpush1.msra.mxu0 %v1213
      %1322 = vmatprep.subr.mxu0 0.0
      %1323 = vmatpush1.msra.mxu0 %v1222
      %1324 = vmatprep.subr.mxu0 0.0
      %1325 = vmatpush1.msra.mxu0 0.0
      %1326 = vmatprep.subr.mxu0 0.0
      %1327 = vmatpush1.msra.mxu0 0.0
      %1328 = vmatprep.subr.mxu0 0.0
      %1329 = vmatpush1.msra.mxu0 0.0
      %1330 = vmatprep.subr.mxu0 0.0
      %1331 = vmatpush1.msra.mxu0 0.0
      %1332 = vmatprep.subr.mxu0 0.0
      %1333 = vmatpush1.msra.mxu0 0.0
      %1334 = vmatprep.subr.mxu0 0.0
      %1335 = vmatpush1.msra.mxu0 0.0
      %1336 = vmatprep.subr.mxu0 0.0
      %1337 = vmatpush1.msra.mxu0 0.0
      %1338 = vmatprep.subr.mxu0 0.0
      %1339 = vmatpush1.msra.mxu0 0.0
      %1340 = vmatprep.subr.mxu0 0.0
      %1341 = vmatpush1.msra.mxu0 0.0
      %1342 = vmatprep.subr.mxu0 0.0
      %1343 = vmatpush1.msra.mxu0 0.0
      %1344 = vmatprep.subr.mxu0 0.0
      %1345 = vmatpush1.msra.mxu0 0.0
      %1346 = vmatprep.subr.mxu0 0.0
      %1347 = vmatpush1.msra.mxu0 0.0
      %1348 = vmatprep.subr.mxu0 0.0
      %1349 = vmatpush1.msra.mxu0 0.0
      %1350 = vmatprep.subr.mxu0 0.0
      %1351 = vmatpush1.msra.mxu0 0.0
      %1352 = vmatprep.subr.mxu0 0.0
      %1353 = vmatpush1.msra.mxu0 0.0
      %1354 = vmatprep.subr.mxu0 0.0
      %1355 = vmatpush1.msra.mxu0 0.0
      %1356 = vmatprep.subr.mxu0 0.0
      %1357 = vmatpush1.msra.mxu0 0.0
      %1358 = vmatprep.subr.mxu0 0.0
      %1359 = vmatpush1.msra.mxu0 0.0
      %1360 = vmatprep.subr.mxu0 0.0
      %1361 = vmatpush1.msra.mxu0 0.0
      %1362 = vmatprep.subr.mxu0 0.0
      %1363 = vmatpush1.msra.mxu0 0.0
      %1364 = vmatprep.subr.mxu0 0.0
      %1365 = vmatpush1.msra.mxu0 0.0
      %1366 = vmatprep.subr.mxu0 0.0
      %1367 = vmatpush1.msra.mxu0 0.0
      %1368 = vmatprep.subr.mxu0 0.0
      %1369 = vmatpush1.msra.mxu0 0.0
      %1370 = vmatprep.mubr.f32.mxu0 0.0
      %1371 = vmatmul.mubr.f32.gmra.mrb[0].mxu0 %v1233
      %v1372 = vpop.f32.mrb[0].mxu0
      %v1373 = vadd.f32 %v1230, %v1372
      %v1374 = vpop.f32.mrb[0].mxu0
      %1375 = vdwg.mxu0
      %v1376 = vmul.f32 %v1302, %v443
      %v1377 = vmul.f32 %v1304, %v447
      %v1378 = vmul.f32 %v1373, %v451
      %v1379 = vadd.f32 %v1376, %v917
      %v1380 = vadd.f32 %v1377, %v918
      %v1381 = vadd.f32 %v1378, %v919
      %1382 = vrot.lane.b32.xlu0 %v1379, 19
      %v1383 = vpop.permute.xlu0 %1382
      %1384 = vrot.lane.b32.xlu0 %v1380, 19
      %v1385 = vpop.permute.xlu0 %1384
      %1386 = vrot.lane.b32.xlu0 %v1381, 19
      %v1387 = vpop.permute.xlu0 %1386
      %v1388 = vsel %vm210, %v1385, %v1387
      %v1389 = vsel %vm210, %v1383, %v1385
      %v1390 = vsel %vm210, %v1387, %v1383
      %1391 = vrot.lane.b32.xlu0 %v1379, 18
      %v1392 = vpop.permute.xlu0 %1391
      %1393 = vrot.lane.b32.xlu0 %v1380, 18
      %v1394 = vpop.permute.xlu0 %1393
      %1395 = vrot.lane.b32.xlu0 %v1381, 18
      %v1396 = vpop.permute.xlu0 %1395
      %v1397 = vsel %vm220, %v1394, %v1396
      %v1398 = vsel %vm220, %v1392, %v1394
      %v1399 = vsel %vm220, %v1396, %v1392
      %1400 = vrot.lane.b32.xlu0 %v1379, 17
      %v1401 = vpop.permute.xlu0 %1400
      %1402 = vrot.lane.b32.xlu0 %v1380, 17
      %v1403 = vpop.permute.xlu0 %1402
      %1404 = vrot.lane.b32.xlu0 %v1381, 17
      %v1405 = vpop.permute.xlu0 %1404
      %v1406 = vsel %vm230, %v1403, %v1405
      %v1407 = vsel %vm230, %v1401, %v1403
      %v1408 = vsel %vm230, %v1405, %v1401
      %1409 = vrot.lane.b32.xlu0 %v1379, 1
      %v1410 = vpop.permute.xlu0 %1409
      %1411 = vrot.lane.b32.xlu0 %v1380, 1
      %v1412 = vpop.permute.xlu0 %1411
      %1413 = vrot.lane.b32.xlu0 %v1381, 1
      %v1414 = vpop.permute.xlu0 %1413
      %v1415 = vsel %vm240, %v1412, %v1414
      %v1416 = vsel %vm240, %v1410, %v1412
      %v1417 = vsel %vm240, %v1414, %v1410
      %1418 = vrot.lane.b32.xlu0 %v1379, 127
      %v1419 = vpop.permute.xlu0 %1418
      %1420 = vrot.lane.b32.xlu0 %v1380, 127
      %v1421 = vpop.permute.xlu0 %1420
      %1422 = vrot.lane.b32.xlu0 %v1381, 127
      %v1423 = vpop.permute.xlu0 %1422
      %v1424 = vsel %vm250, %v1421, %v1423
      %v1425 = vsel %vm250, %v1419, %v1421
      %v1426 = vsel %vm250, %v1423, %v1419
      %1427 = vrot.lane.b32.xlu0 %v1379, 111
      %v1428 = vpop.permute.xlu0 %1427
      %1429 = vrot.lane.b32.xlu0 %v1380, 111
      %v1430 = vpop.permute.xlu0 %1429
      %1431 = vrot.lane.b32.xlu0 %v1381, 111
      %v1432 = vpop.permute.xlu0 %1431
      %v1433 = vsel %vm260, %v1430, %v1432
      %v1434 = vsel %vm260, %v1428, %v1430
      %v1435 = vsel %vm260, %v1432, %v1428
      %1436 = vrot.lane.b32.xlu0 %v1379, 110
      %v1437 = vpop.permute.xlu0 %1436
      %1438 = vrot.lane.b32.xlu0 %v1380, 110
      %v1439 = vpop.permute.xlu0 %1438
      %1440 = vrot.lane.b32.xlu0 %v1381, 110
      %v1441 = vpop.permute.xlu0 %1440
      %v1442 = vsel %vm270, %v1439, %v1441
      %v1443 = vsel %vm270, %v1437, %v1439
      %v1444 = vsel %vm270, %v1441, %v1437
      %1445 = vrot.lane.b32.xlu0 %v1379, 109
      %v1446 = vpop.permute.xlu0 %1445
      %1447 = vrot.lane.b32.xlu0 %v1380, 109
      %v1448 = vpop.permute.xlu0 %1447
      %1449 = vrot.lane.b32.xlu0 %v1381, 109
      %v1450 = vpop.permute.xlu0 %1449
      %v1451 = vsel %vm280, %v1448, %v1450
      %v1452 = vsel %vm280, %v1446, %v1448
      %v1453 = vsel %vm280, %v1450, %v1446
      %s1454 = scalar_lea.vmem %s2, 40
      %v1455 = vld [vmem:[%s1454] sm:$0xff]
      %s1456 = scalar_lea.vmem %s3, 40
      %v1457 = vld [vmem:[%s1456] sm:$0xff]
      %1459 = vset.pattern.permute.xlu0 0
      %1460 = vperm.xlu0 %1459, %v1457
      %v1461 = vpop.permute.xlu0 %1460
      %v1464 = vsel %vm291, %v1455, 0
      %1466 = vmatprep.subr.mxu0 %v1389
      %1467 = vmatpush1.msra.mxu0 %v1390
      %1468 = vmatprep.subr.mxu0 %v1398
      %1469 = vmatpush1.msra.mxu0 %v1399
      %1470 = vmatprep.subr.mxu0 %v1407
      %1471 = vmatpush1.msra.mxu0 %v1408
      %1472 = vmatprep.subr.mxu0 %v1416
      %1473 = vmatpush1.msra.mxu0 %v1417
      %1474 = vmatprep.subr.mxu0 %v1380
      %1475 = vmatpush1.msra.mxu0 %v1379
      %1476 = vmatprep.subr.mxu0 %v1424
      %1477 = vmatpush1.msra.mxu0 %v1425
      %1478 = vmatprep.subr.mxu0 %v1433
      %1479 = vmatpush1.msra.mxu0 %v1434
      %1480 = vmatprep.subr.mxu0 %v1442
      %1481 = vmatpush1.msra.mxu0 %v1443
      %1482 = vmatprep.subr.mxu0 %v1451
      %1483 = vmatpush1.msra.mxu0 %v1452
      %1484 = vmatprep.subr.mxu0 0.0
      %1485 = vmatpush1.msra.mxu0 0.0
      %1486 = vmatprep.subr.mxu0 0.0
      %1487 = vmatpush1.msra.mxu0 0.0
      %1488 = vmatprep.subr.mxu0 0.0
      %1489 = vmatpush1.msra.mxu0 0.0
      %1490 = vmatprep.subr.mxu0 0.0
      %1491 = vmatpush1.msra.mxu0 0.0
      %1492 = vmatprep.subr.mxu0 0.0
      %1493 = vmatpush1.msra.mxu0 0.0
      %1494 = vmatprep.subr.mxu0 0.0
      %1495 = vmatpush1.msra.mxu0 0.0
      %1496 = vmatprep.subr.mxu0 0.0
      %1497 = vmatpush1.msra.mxu0 0.0
      %1498 = vmatprep.subr.mxu0 0.0
      %1499 = vmatpush1.msra.mxu0 0.0
      %1500 = vmatprep.subr.mxu0 0.0
      %1501 = vmatpush1.msra.mxu0 0.0
      %1502 = vmatprep.subr.mxu0 0.0
      %1503 = vmatpush1.msra.mxu0 0.0
      %1504 = vmatprep.subr.mxu0 0.0
      %1505 = vmatpush1.msra.mxu0 0.0
      %1506 = vmatprep.subr.mxu0 0.0
      %1507 = vmatpush1.msra.mxu0 0.0
      %1508 = vmatprep.subr.mxu0 0.0
      %1509 = vmatpush1.msra.mxu0 0.0
      %1510 = vmatprep.subr.mxu0 0.0
      %1511 = vmatpush1.msra.mxu0 0.0
      %1512 = vmatprep.subr.mxu0 0.0
      %1513 = vmatpush1.msra.mxu0 0.0
      %1514 = vmatprep.subr.mxu0 0.0
      %1515 = vmatpush1.msra.mxu0 0.0
      %1516 = vmatprep.subr.mxu0 0.0
      %1517 = vmatpush1.msra.mxu0 0.0
      %1518 = vmatprep.subr.mxu0 0.0
      %1519 = vmatpush1.msra.mxu0 0.0
      %1520 = vmatprep.subr.mxu0 0.0
      %1521 = vmatpush1.msra.mxu0 0.0
      %1522 = vmatprep.subr.mxu0 0.0
      %1523 = vmatpush1.msra.mxu0 0.0
      %1524 = vmatprep.subr.mxu0 0.0
      %1525 = vmatpush1.msra.mxu0 0.0
      %1526 = vmatprep.subr.mxu0 0.0
      %1527 = vmatpush1.msra.mxu0 0.0
      %1528 = vmatprep.subr.mxu0 0.0
      %1529 = vmatpush1.msra.mxu0 0.0
      %1530 = vmatprep.mubr.f32.mxu0 0.0
      %1531 = vmatmul.mubr.f32.gmra.mrb[0].mxu0 %v1464
      %v1532 = vpop.f32.mrb[0].mxu0
      %v1533 = vadd.f32 %v1461, %v1532
      %v1534 = vpop.f32.mrb[0].mxu0
      %v1535 = vadd.f32 %v1461, %v1534
      %1536 = vdwg.mxu0
      %1537 = vmatprep.subr.mxu0 0.0
      %1538 = vmatpush1.msra.mxu0 %v1388
      %1539 = vmatprep.subr.mxu0 0.0
      %1540 = vmatpush1.msra.mxu0 %v1397
      %1541 = vmatprep.subr.mxu0 0.0
      %1542 = vmatpush1.msra.mxu0 %v1406
      %1543 = vmatprep.subr.mxu0 0.0
      %1544 = vmatpush1.msra.mxu0 %v1415
      %1545 = vmatprep.subr.mxu0 0.0
      %1546 = vmatpush1.msra.mxu0 %v1381
      %1547 = vmatprep.subr.mxu0 0.0
      %1548 = vmatpush1.msra.mxu0 %v1426
      %1549 = vmatprep.subr.mxu0 0.0
      %1550 = vmatpush1.msra.mxu0 %v1435
      %1551 = vmatprep.subr.mxu0 0.0
      %1552 = vmatpush1.msra.mxu0 %v1444
      %1553 = vmatprep.subr.mxu0 0.0
      %1554 = vmatpush1.msra.mxu0 %v1453
      %1555 = vmatprep.subr.mxu0 0.0
      %1556 = vmatpush1.msra.mxu0 0.0
      %1557 = vmatprep.subr.mxu0 0.0
      %1558 = vmatpush1.msra.mxu0 0.0
      %1559 = vmatprep.subr.mxu0 0.0
      %1560 = vmatpush1.msra.mxu0 0.0
      %1561 = vmatprep.subr.mxu0 0.0
      %1562 = vmatpush1.msra.mxu0 0.0
      %1563 = vmatprep.subr.mxu0 0.0
      %1564 = vmatpush1.msra.mxu0 0.0
      %1565 = vmatprep.subr.mxu0 0.0
      %1566 = vmatpush1.msra.mxu0 0.0
      %1567 = vmatprep.subr.mxu0 0.0
      %1568 = vmatpush1.msra.mxu0 0.0
      %1569 = vmatprep.subr.mxu0 0.0
      %1570 = vmatpush1.msra.mxu0 0.0
      %1571 = vmatprep.subr.mxu0 0.0
      %1572 = vmatpush1.msra.mxu0 0.0
      %1573 = vmatprep.subr.mxu0 0.0
      %1574 = vmatpush1.msra.mxu0 0.0
      %1575 = vmatprep.subr.mxu0 0.0
      %1576 = vmatpush1.msra.mxu0 0.0
      %1577 = vmatprep.subr.mxu0 0.0
      %1578 = vmatpush1.msra.mxu0 0.0
      %1579 = vmatprep.subr.mxu0 0.0
      %1580 = vmatpush1.msra.mxu0 0.0
      %1581 = vmatprep.subr.mxu0 0.0
      %1582 = vmatpush1.msra.mxu0 0.0
      %1583 = vmatprep.subr.mxu0 0.0
      %1584 = vmatpush1.msra.mxu0 0.0
      %1585 = vmatprep.subr.mxu0 0.0
      %1586 = vmatpush1.msra.mxu0 0.0
      %1587 = vmatprep.subr.mxu0 0.0
      %1588 = vmatpush1.msra.mxu0 0.0
      %1589 = vmatprep.subr.mxu0 0.0
      %1590 = vmatpush1.msra.mxu0 0.0
      %1591 = vmatprep.subr.mxu0 0.0
      %1592 = vmatpush1.msra.mxu0 0.0
      %1593 = vmatprep.subr.mxu0 0.0
      %1594 = vmatpush1.msra.mxu0 0.0
      %1595 = vmatprep.subr.mxu0 0.0
      %1596 = vmatpush1.msra.mxu0 0.0
      %1597 = vmatprep.subr.mxu0 0.0
      %1598 = vmatpush1.msra.mxu0 0.0
      %1599 = vmatprep.subr.mxu0 0.0
      %1600 = vmatpush1.msra.mxu0 0.0
      %1601 = vmatprep.mubr.f32.mxu0 0.0
      %1602 = vmatmul.mubr.f32.gmra.mrb[0].mxu0 %v1464
      %v1603 = vpop.f32.mrb[0].mxu0
      %v1604 = vadd.f32 %v1461, %v1603
      %v1605 = vpop.f32.mrb[0].mxu0
      %1606 = vdwg.mxu0
      %v1607 = vmul.f32 %v1533, %v443
      %v1608 = vmul.f32 %v1535, %v447
      %v1609 = vmul.f32 %v1604, %v451
      %1610 = vst [vmem:[%s197] sm:$0xff] %v1607
      %1611 = vst [vmem:[%s197 + $0x8] sm:$0xff] %v1608
      %1612 = vst [vmem:[%s197 + $0x10] sm:$0xff] %v1609
      %p1613 = scmp.lt.s32.totalorder %s15, 1
      %s1614 = scalar_select %p1613, %s15, 1
      %s1615 = smul.addr %s1614, 3
      %s1616 = smul.addr %s1615, 8
      %s1617 = scalar_lea.vmem %s4, %s1616
      // Predicated region
      $region37: #{_lambda_.1} parent=35 // pred_check
        %p1618 = pneg %p122
      $region38: #{_lambda_.1} parent=35 // pred_check_branch
        %1620 = sbr.rel (%p1618) target = $region40
      $region39: #{_lambda_.1} parent=35 // pred_region
        _
      $region40: #{_lambda_.1} parent=35 // pred_fallthru
        _
    $region36: #{_lambda_.1} parent=5 // pred_fallthru
      _
    %p1621 = scmp.le.s32.totalorder 2, %s10
    // Predicated region
    $region41: #{_lambda_.1} parent=5 // pred_check
      %p1622 = pneg %p1621
    $region42: #{_lambda_.1} parent=5 // pred_check_branch
      %1624 = sbr.rel (%p1622) target = $region44
    $region43: #{_lambda_.1} parent=5 // pred_region
      %s1625 = ssub.s32 %s10, 2
      // Predicated region
      $region45: #{_lambda_.1} parent=43 // pred_check
        %p1626 = pneg %p128
      $region46: #{_lambda_.1} parent=43 // pred_check_branch
        %1628 = sbr.rel (%p1626) target = $region48
      $region47: #{_lambda_.1} parent=43 // pred_region
        %p1629 = scmp.lt.s32.totalorder %s16, 1
        %s1630 = scalar_select %p1629, %s16, 1
        %s1631 = smul.addr %s1630, 3
        %s1632 = smul.addr %s1631, 8
        %s1633 = scalar_lea.vmem %s4, %s1632
      $region48: #{_lambda_.1} parent=43 // pred_fallthru
        _
    $region44: #{_lambda_.1} parent=5 // pred_fallthru
      _
  $region6: #{_lambda_.1} parent=0 // loop_footer
    %s14 = sadd.s32 1, %s10
  $region7: #{_lambda_.1} parent=0 // loop_footer_branch
    %9 = sbr.rel target = $region3
  $region8: #{_lambda_.1} parent=0 // loop_exit
    _

</llo_original>
